<compile_context>
chip_gen: v7x
topology: tpu7x:2x2x1
jax: 0.10.0
libtpu: 0.0.40
codegen_flags: <defaults>
</compile_context>

<pallas_src>
from functools import partial

import jax
import jax.numpy as jnp
from jax import lax
from jax.experimental import pallas as pl
from jax.experimental.pallas import tpu as pltpu


# ------------------------- fused embedding+RNN+head kernel -------------------
def _make_fused_kernel(L, T, B, H, O, Hp, Vp):
    """Fused kernel for fixed (L, T, B, H, O) with lane padding Hp/Vp (=128).

    Ref order (positional):
      lengths(B,1) i32 , ids(B,T) i32 ,
      table0(Vp,Hp) f32            # emb @ W_ih0^T, zero padded
      wstack(2L,Hp,Hp) bf16        # [W_ih_1^T..W_ih_{L-1}^T, W_hh_0^T..W_hh_{L-1}^T, W_out^T]
      bstack(L+1,Hp) f32           # rows 0..L-1: b_ih+b_hh ; row L: b_out
      out(B,O) f32 , h(L,B,H) f32
    """

    def kernel(len_ref, ids_ref, table0_ref, wstack_ref, bstack_ref,
               out_ref, h_ref):
        lm1 = len_ref[...] - 1                                  # (B,1) lengths-1
        ids = ids_ref[...]                                      # (B,T) int32
        iota_v = lax.broadcasted_iota(jnp.int32, (B, Vp), 1)    # vocab lanes
        table0 = table0_ref[...]                                # (Vp,Hp) f32

        h_last = jnp.zeros((B, Hp), jnp.float32)
        prev_seq = None                                         # list of (B,Hp) f32
        for l in range(L):
            bias = bstack_ref[l:l + 1, :]                       # (1,Hp) f32

            # ---- hoisted input projection for this layer -------------------
            if l == 0:
                # fused embedding lookup + layer-0 input projection:
                # one-hot(ids[:,t]) @ (emb @ W_ih0^T).  Off the serial chain.
                pre_steps = []
                for t in range(T):
                    ids_t = ids[:, t:t + 1]                     # (B,1) int32
                    onehot_t = (ids_t == iota_v).astype(jnp.float32)   # (B,Vp)
                    pre_steps.append(
                        jnp.dot(onehot_t, table0,
                                preferred_element_type=jnp.float32) + bias)
            else:
                wih = wstack_ref[l - 1]                         # (Hp,Hp) bf16
                x_seq = jnp.concatenate(prev_seq, axis=0)       # (T*B,Hp) f32
                pre = jnp.dot(x_seq.astype(jnp.bfloat16), wih,
                              preferred_element_type=jnp.float32) + bias
                pre_steps = [pre[t * B:(t + 1) * B, :] for t in range(T)]

            # ---- serial recurrence (fully unrolled, bf16 MXU operands) -----
            whh = wstack_ref[(L - 1) + l]                       # (Hp,Hp) bf16
            h = jnp.zeros((B, Hp), jnp.float32)
            h_last = jnp.zeros((B, Hp), jnp.float32)
            seq = []
            for t in range(T):
                h = jnp.tanh(pre_steps[t] +
                             jnp.dot(h.astype(jnp.bfloat16), whh,
                                     preferred_element_type=jnp.float32))
                # packed-sequence semantics: keep h at t == lengths[b]-1
                h_last = jnp.where(lm1 == t, h, h_last)
                if l < L - 1:
                    seq.append(h)                               # stays in vregs
            prev_seq = seq
            h_ref[l] = h_last[:, :H]                            # per-layer h_n

        # ---- Linear + LogSoftmax head on the final layer's last hidden -----
        wout = wstack_ref[2 * L - 1]                            # (Hp,Hp) bf16
        bout = bstack_ref[L:L + 1, :]                           # (1,Hp) f32
        logits = jnp.dot(h_last.astype(jnp.bfloat16), wout,
                         preferred_element_type=jnp.float32) + bout   # (B,Hp)
        cls = lax.broadcasted_iota(jnp.int32, (B, Hp), 1)
        logits = jnp.where(cls < O, logits, jnp.float32(-1e30))  # mask padding
        m = jnp.max(logits, axis=1, keepdims=True)
        shifted = logits - m
        lse = jnp.log(jnp.sum(jnp.exp(shifted), axis=1, keepdims=True))
        out_ref[...] = (shifted - lse)[:, :O]                   # log_softmax

    return kernel


# ------------------------------ param prep -----------------------------------
def prepare_params(params, Hp=128, Vp=128):
    """One-time prep: fold embedding into layer-0 projection, transpose, pad to
    128 lanes, cast matmul weights to bf16 and pack into 3 dense arrays."""
    emb = params["embedding"]                    # (V, D) f32
    rnn = params["rnn"]                          # [(w_ih, w_hh, b_ih, b_hh)]*L
    L = len(rnn)
    H = rnn[0][0].shape[0]
    O = params["w_out"].shape[0]

    def pad2(a, r, c):
        return jnp.zeros((r, c), jnp.float32).at[:a.shape[0], :a.shape[1]].set(a)

    # layer-0: embedding folded into the input projection -> (Vp, Hp) table
    table0 = pad2(emb @ rnn[0][0].T, Vp, Hp)

    # stacked bf16 weights: [W_ih_1^T..W_ih_{L-1}^T, W_hh_0^T..W_hh_{L-1}^T, W_out^T]
    mats = [pad2(rnn[l][0].T, Hp, Hp) for l in range(1, L)]
    mats += [pad2(rnn[l][1].T, Hp, Hp) for l in range(L)]
    mats.append(pad2(params["w_out"].T, Hp, Hp))
    wstack = jnp.stack(mats, axis=0).astype(jnp.bfloat16)       # (2L, Hp, Hp)

    # stacked f32 biases: rows 0..L-1 = b_ih+b_hh ; row L = b_out
    brows = [jnp.zeros((Hp,), jnp.float32).at[:H].set(rnn[l][2] + rnn[l][3])
             for l in range(L)]
    brows.append(jnp.zeros((Hp,), jnp.float32).at[:O].set(params["b_out"]))
    bstack = jnp.stack(brows, axis=0)                           # (L+1, Hp)

    prepped = {"table0": table0, "wstack": wstack, "bstack": bstack}
    return prepped, (H, O)


# ------------------------------- Full forward --------------------------------
def textclass_forward(prepped, inputs, lengths, dims):
    """inputs: (B, T) int token ids; lengths: (B,) ints sorted descending
    (pack_padded_sequence precondition).  Returns (log_probs, h_n)."""
    H, O = dims
    B, T = inputs.shape
    Vp, Hp = prepped["table0"].shape
    L = prepped["bstack"].shape[0] - 1

    ids = inputs.astype(jnp.int32)
    lengths2d = lengths.reshape(B, 1).astype(jnp.int32)

    kernel = _make_fused_kernel(L, T, B, H, O, Hp, Vp)

    out, h = pl.pallas_call(
        kernel,
        out_shape=(
            jax.ShapeDtypeStruct((B, O), jnp.float32),
            jax.ShapeDtypeStruct((L, B, H), jnp.float32),
        ),
        in_specs=[
            pl.BlockSpec((B, 1), lambda: (0, 0)),
            pl.BlockSpec((B, T), lambda: (0, 0)),
            pl.BlockSpec((Vp, Hp), lambda: (0, 0)),
            pl.BlockSpec((2 * L, Hp, Hp), lambda: (0, 0, 0)),
            pl.BlockSpec((L + 1, Hp), lambda: (0, 0)),
        ],
        out_specs=(
            pl.BlockSpec((B, O), lambda: (0, 0)),
            pl.BlockSpec((L, B, H), lambda: (0, 0, 0)),
        ),
        compiler_params=pltpu.CompilerParams(
            vmem_limit_bytes=32 * 1024 * 1024),
    )(lengths2d, ids, prepped["table0"], prepped["wstack"], prepped["bstack"])
    return out, h


# -------------------------- pure-JAX reference check -------------------------
def _reference(params, inputs, lengths):
    x = jnp.take(params["embedding"], inputs, axis=0)
    x_tm = jnp.transpose(x, (1, 0, 2))
    B = inputs.shape[0]
    hs = []
    layer_in = x_tm
    for (w_ih, w_hh, b_ih, b_hh) in params["rnn"]:
        Hsz = w_ih.shape[0]

        def step(h, x_t):
            h_new = jnp.tanh(x_t @ w_ih.T + h @ w_hh.T + b_ih + b_hh)
            return h_new, h_new

        _, out_tm = lax.scan(step, jnp.zeros((B, Hsz), jnp.float32), layer_in)
        hs.append(out_tm[lengths - 1, jnp.arange(B), :])
        layer_in = out_tm
    h = jnp.stack(hs, axis=0)
    logits = hs[-1] @ params["w_out"].T + params["b_out"]
    out = jax.nn.log_softmax(logits, axis=1)
    return out, h


if __name__ == "__main__":
    # Small shapes consistent with the module:
    V, D, H, L, O = 20, 32, 32, 2, 8      # vocab, x_feature, h_state, n_layers, out_h
    B, T = 4, 8

    key = jax.random.PRNGKey(0)
    ks = jax.random.split(key, 4 + 4 * L)
    scale = 1.0 / jnp.sqrt(jnp.float32(H))

    rnn_params = []
    for l in range(L):
        d_in = D if l == 0 else H
        k0, k1, k2, k3 = ks[4 + 4 * l: 8 + 4 * l]
        rnn_params.append((
            jax.random.uniform(k0, (H, d_in), jnp.float32, -scale, scale),  # W_ih
            jax.random.uniform(k1, (H, H), jnp.float32, -scale, scale),     # W_hh
            jax.random.uniform(k2, (H,), jnp.float32, -scale, scale),       # b_ih
            jax.random.uniform(k3, (H,), jnp.float32, -scale, scale),       # b_hh
        ))

    params = {
        "embedding": jax.random.normal(ks[0], (V, D), jnp.float32),
        "rnn": rnn_params,
        "w_out": jax.random.uniform(ks[1], (O, H), jnp.float32, -scale, scale),
        "b_out": jax.random.uniform(ks[2], (O,), jnp.float32, -scale, scale),
    }

    inputs = jax.random.randint(ks[3], (B, T), 0, V, dtype=jnp.int32)
    lengths = jnp.array([8, 6, 4, 2], dtype=jnp.int32)   # sorted descending

    prepped, dims = prepare_params(params)               # fold/pad/pack once
    fwd = jax.jit(partial(textclass_forward, dims=dims))

    out, h = fwd(prepped, inputs, lengths)
    out = jax.block_until_ready(out)
    h = jax.block_until_ready(h)

    out_expect, h_expect = _reference(params, inputs, lengths)
    assert out.shape == (B, O) and h.shape == (L, B, H)
    # bf16 MXU operands => tolerance loosened from 1e-5 to 5e-2
    assert jnp.allclose(out, out_expect, atol=5e-2), "log-softmax output mismatch"
    assert jnp.allclose(h, h_expect, atol=5e-2), "final hidden state mismatch"

    print("KERNEL_OK")
</pallas_src>

<mosaic_0001>
module attributes {stable_mosaic.version = 11 : i64} {
  func.func @kernel(%arg0: memref<4x1xi32, #tpu.memory_space<vmem>>, %arg1: memref<4x8xi32, #tpu.memory_space<vmem>>, %arg2: memref<128x128xf32, #tpu.memory_space<vmem>>, %arg3: memref<4x128x128xbf16, #tpu.memory_space<vmem>>, %arg4: memref<3x128xf32, #tpu.memory_space<vmem>>, %arg5: memref<4x8xf32, #tpu.memory_space<vmem>>, %arg6: memref<2x4x32xf32, #tpu.memory_space<vmem>>) attributes {dimension_semantics = [], scalar_prefetch = 0 : i64, scratch_operands = 0 : i64, tpu.core_type = #tpu.core_type<tc>} {
    %c0 = arith.constant 0 : index
    %c0_0 = arith.constant 0 : index
    %0 = vector.load %arg0[%c0, %c0_0] : memref<4x1xi32, #tpu.memory_space<vmem>>, vector<4x1xi32>
    %c1_i32 = arith.constant 1 : i32
    %1 = vector.broadcast %c1_i32 : i32 to vector<4x1xi32>
    %2 = arith.subi %0, %1 : vector<4x1xi32>
    %c0_1 = arith.constant 0 : index
    %c0_2 = arith.constant 0 : index
    %3 = vector.load %arg1[%c0_1, %c0_2] : memref<4x8xi32, #tpu.memory_space<vmem>>, vector<4x8xi32>
    %4 = tpu.iota {dimensions = array<i32: 1>} : vector<4x128xi32>
    %c0_3 = arith.constant 0 : index
    %c0_4 = arith.constant 0 : index
    %5 = vector.load %arg2[%c0_3, %c0_4] : memref<128x128xf32, #tpu.memory_space<vmem>>, vector<128x128xf32>
    %c0_5 = arith.constant 0 : index
    %c0_6 = arith.constant 0 : index
    %6 = vector.load %arg4[%c0_5, %c0_6] : memref<3x128xf32, #tpu.memory_space<vmem>>, vector<1x128xf32>
    %7 = vector.extract_strided_slice %3 {offsets = [0, 0], sizes = [4, 1], strides = [1, 1]} : vector<4x8xi32> to vector<4x1xi32>
    %8 = vector.broadcast %7 : vector<4x1xi32> to vector<4x128xi32>
    %9 = arith.cmpi eq, %8, %4 : vector<4x128xi32>
    %10 = arith.extui %9 : vector<4x128xi1> to vector<4x128xi32>
    %11 = arith.sitofp %10 : vector<4x128xi32> to vector<4x128xf32>
    %cst = arith.constant dense<0.000000e+00> : vector<4x128xf32>
    %12 = tpu.matmul %11, %5, %cst {dimension_numbers = #tpu.dot_dimension_numbers<[1], [0], [0], [1], [0, 0, 1, 1], [], []>} : vector<4x128xf32>, vector<128x128xf32>, vector<4x128xf32> -> vector<4x128xf32>
    %13 = vector.broadcast %6 : vector<1x128xf32> to vector<4x128xf32>
    %14 = arith.addf %12, %13 : vector<4x128xf32>
    %15 = vector.extract_strided_slice %3 {offsets = [0, 1], sizes = [4, 1], strides = [1, 1]} : vector<4x8xi32> to vector<4x1xi32>
    %16 = vector.broadcast %15 : vector<4x1xi32> to vector<4x128xi32>
    %17 = arith.cmpi eq, %16, %4 : vector<4x128xi32>
    %18 = arith.extui %17 : vector<4x128xi1> to vector<4x128xi32>
    %19 = arith.sitofp %18 : vector<4x128xi32> to vector<4x128xf32>
    %cst_7 = arith.constant dense<0.000000e+00> : vector<4x128xf32>
    %20 = tpu.matmul %19, %5, %cst_7 {dimension_numbers = #tpu.dot_dimension_numbers<[1], [0], [0], [1], [0, 0, 1, 1], [], []>} : vector<4x128xf32>, vector<128x128xf32>, vector<4x128xf32> -> vector<4x128xf32>
    %21 = vector.broadcast %6 : vector<1x128xf32> to vector<4x128xf32>
    %22 = arith.addf %20, %21 : vector<4x128xf32>
    %23 = vector.extract_strided_slice %3 {offsets = [0, 2], sizes = [4, 1], strides = [1, 1]} : vector<4x8xi32> to vector<4x1xi32>
    %24 = vector.broadcast %23 : vector<4x1xi32> to vector<4x128xi32>
    %25 = arith.cmpi eq, %24, %4 : vector<4x128xi32>
    %26 = arith.extui %25 : vector<4x128xi1> to vector<4x128xi32>
    %27 = arith.sitofp %26 : vector<4x128xi32> to vector<4x128xf32>
    %cst_8 = arith.constant dense<0.000000e+00> : vector<4x128xf32>
    %28 = tpu.matmul %27, %5, %cst_8 {dimension_numbers = #tpu.dot_dimension_numbers<[1], [0], [0], [1], [0, 0, 1, 1], [], []>} : vector<4x128xf32>, vector<128x128xf32>, vector<4x128xf32> -> vector<4x128xf32>
    %29 = vector.broadcast %6 : vector<1x128xf32> to vector<4x128xf32>
    %30 = arith.addf %28, %29 : vector<4x128xf32>
    %31 = vector.extract_strided_slice %3 {offsets = [0, 3], sizes = [4, 1], strides = [1, 1]} : vector<4x8xi32> to vector<4x1xi32>
    %32 = vector.broadcast %31 : vector<4x1xi32> to vector<4x128xi32>
    %33 = arith.cmpi eq, %32, %4 : vector<4x128xi32>
    %34 = arith.extui %33 : vector<4x128xi1> to vector<4x128xi32>
    %35 = arith.sitofp %34 : vector<4x128xi32> to vector<4x128xf32>
    %cst_9 = arith.constant dense<0.000000e+00> : vector<4x128xf32>
    %36 = tpu.matmul %35, %5, %cst_9 {dimension_numbers = #tpu.dot_dimension_numbers<[1], [0], [0], [1], [0, 0, 1, 1], [], []>} : vector<4x128xf32>, vector<128x128xf32>, vector<4x128xf32> -> vector<4x128xf32>
    %37 = vector.broadcast %6 : vector<1x128xf32> to vector<4x128xf32>
    %38 = arith.addf %36, %37 : vector<4x128xf32>
    %39 = vector.extract_strided_slice %3 {offsets = [0, 4], sizes = [4, 1], strides = [1, 1]} : vector<4x8xi32> to vector<4x1xi32>
    %40 = vector.broadcast %39 : vector<4x1xi32> to vector<4x128xi32>
    %41 = arith.cmpi eq, %40, %4 : vector<4x128xi32>
    %42 = arith.extui %41 : vector<4x128xi1> to vector<4x128xi32>
    %43 = arith.sitofp %42 : vector<4x128xi32> to vector<4x128xf32>
    %cst_10 = arith.constant dense<0.000000e+00> : vector<4x128xf32>
    %44 = tpu.matmul %43, %5, %cst_10 {dimension_numbers = #tpu.dot_dimension_numbers<[1], [0], [0], [1], [0, 0, 1, 1], [], []>} : vector<4x128xf32>, vector<128x128xf32>, vector<4x128xf32> -> vector<4x128xf32>
    %45 = vector.broadcast %6 : vector<1x128xf32> to vector<4x128xf32>
    %46 = arith.addf %44, %45 : vector<4x128xf32>
    %47 = vector.extract_strided_slice %3 {offsets = [0, 5], sizes = [4, 1], strides = [1, 1]} : vector<4x8xi32> to vector<4x1xi32>
    %48 = vector.broadcast %47 : vector<4x1xi32> to vector<4x128xi32>
    %49 = arith.cmpi eq, %48, %4 : vector<4x128xi32>
    %50 = arith.extui %49 : vector<4x128xi1> to vector<4x128xi32>
    %51 = arith.sitofp %50 : vector<4x128xi32> to vector<4x128xf32>
    %cst_11 = arith.constant dense<0.000000e+00> : vector<4x128xf32>
    %52 = tpu.matmul %51, %5, %cst_11 {dimension_numbers = #tpu.dot_dimension_numbers<[1], [0], [0], [1], [0, 0, 1, 1], [], []>} : vector<4x128xf32>, vector<128x128xf32>, vector<4x128xf32> -> vector<4x128xf32>
    %53 = vector.broadcast %6 : vector<1x128xf32> to vector<4x128xf32>
    %54 = arith.addf %52, %53 : vector<4x128xf32>
    %55 = vector.extract_strided_slice %3 {offsets = [0, 6], sizes = [4, 1], strides = [1, 1]} : vector<4x8xi32> to vector<4x1xi32>
    %56 = vector.broadcast %55 : vector<4x1xi32> to vector<4x128xi32>
    %57 = arith.cmpi eq, %56, %4 : vector<4x128xi32>
    %58 = arith.extui %57 : vector<4x128xi1> to vector<4x128xi32>
    %59 = arith.sitofp %58 : vector<4x128xi32> to vector<4x128xf32>
    %cst_12 = arith.constant dense<0.000000e+00> : vector<4x128xf32>
    %60 = tpu.matmul %59, %5, %cst_12 {dimension_numbers = #tpu.dot_dimension_numbers<[1], [0], [0], [1], [0, 0, 1, 1], [], []>} : vector<4x128xf32>, vector<128x128xf32>, vector<4x128xf32> -> vector<4x128xf32>
    %61 = vector.broadcast %6 : vector<1x128xf32> to vector<4x128xf32>
    %62 = arith.addf %60, %61 : vector<4x128xf32>
    %63 = vector.extract_strided_slice %3 {offsets = [0, 7], sizes = [4, 1], strides = [1, 1]} : vector<4x8xi32> to vector<4x1xi32>
    %64 = vector.broadcast %63 : vector<4x1xi32> to vector<4x128xi32>
    %65 = arith.cmpi eq, %64, %4 : vector<4x128xi32>
    %66 = arith.extui %65 : vector<4x128xi1> to vector<4x128xi32>
    %67 = arith.sitofp %66 : vector<4x128xi32> to vector<4x128xf32>
    %cst_13 = arith.constant dense<0.000000e+00> : vector<4x128xf32>
    %68 = tpu.matmul %67, %5, %cst_13 {dimension_numbers = #tpu.dot_dimension_numbers<[1], [0], [0], [1], [0, 0, 1, 1], [], []>} : vector<4x128xf32>, vector<128x128xf32>, vector<4x128xf32> -> vector<4x128xf32>
    %69 = vector.broadcast %6 : vector<1x128xf32> to vector<4x128xf32>
    %70 = arith.addf %68, %69 : vector<4x128xf32>
    %c1 = arith.constant 1 : index
    %c0_14 = arith.constant 0 : index
    %c0_15 = arith.constant 0 : index
    %71 = vector.load %arg3[%c1, %c0_14, %c0_15] : memref<4x128x128xbf16, #tpu.memory_space<vmem>>, vector<1x128x128xbf16>
    %72 = vector.shape_cast %71 : vector<1x128x128xbf16> to vector<128x128xbf16>
    %cst_16 = arith.constant 0.000000e+00 : f32
    %73 = vector.broadcast %cst_16 : f32 to vector<4x128xf32>
    %cst_17 = arith.constant 0.000000e+00 : f32
    %74 = vector.broadcast %cst_17 : f32 to vector<4x128xf32>
    %75 = arith.truncf %73 : vector<4x128xf32> to vector<4x128xbf16>
    %cst_18 = arith.constant dense<0.000000e+00> : vector<4x128xf32>
    %76 = tpu.matmul %75, %72, %cst_18 {dimension_numbers = #tpu.dot_dimension_numbers<[1], [0], [0], [1], [0, 0, 1, 1], [], []>} : vector<4x128xbf16>, vector<128x128xbf16>, vector<4x128xf32> -> vector<4x128xf32>
    %77 = arith.addf %14, %76 : vector<4x128xf32>
    %78 = math.tanh %77 : vector<4x128xf32>
    %c0_i32 = arith.constant 0 : i32
    %79 = vector.broadcast %c0_i32 : i32 to vector<4x1xi32>
    %80 = arith.cmpi eq, %2, %79 : vector<4x1xi32>
    %81 = vector.shape_cast %80 : vector<4x1xi1> to vector<4x1xi1>
    %82 = vector.broadcast %81 : vector<4x1xi1> to vector<4x128xi1>
    %83 = arith.select %82, %78, %74 : vector<4x128xi1>, vector<4x128xf32>
    %84 = arith.truncf %78 : vector<4x128xf32> to vector<4x128xbf16>
    %cst_19 = arith.constant dense<0.000000e+00> : vector<4x128xf32>
    %85 = tpu.matmul %84, %72, %cst_19 {dimension_numbers = #tpu.dot_dimension_numbers<[1], [0], [0], [1], [0, 0, 1, 1], [], []>} : vector<4x128xbf16>, vector<128x128xbf16>, vector<4x128xf32> -> vector<4x128xf32>
    %86 = arith.addf %22, %85 : vector<4x128xf32>
    %87 = math.tanh %86 : vector<4x128xf32>
    %c1_i32_20 = arith.constant 1 : i32
    %88 = vector.broadcast %c1_i32_20 : i32 to vector<4x1xi32>
    %89 = arith.cmpi eq, %2, %88 : vector<4x1xi32>
    %90 = vector.shape_cast %89 : vector<4x1xi1> to vector<4x1xi1>
    %91 = vector.broadcast %90 : vector<4x1xi1> to vector<4x128xi1>
    %92 = arith.select %91, %87, %83 : vector<4x128xi1>, vector<4x128xf32>
    %93 = arith.truncf %87 : vector<4x128xf32> to vector<4x128xbf16>
    %cst_21 = arith.constant dense<0.000000e+00> : vector<4x128xf32>
    %94 = tpu.matmul %93, %72, %cst_21 {dimension_numbers = #tpu.dot_dimension_numbers<[1], [0], [0], [1], [0, 0, 1, 1], [], []>} : vector<4x128xbf16>, vector<128x128xbf16>, vector<4x128xf32> -> vector<4x128xf32>
    %95 = arith.addf %30, %94 : vector<4x128xf32>
    %96 = math.tanh %95 : vector<4x128xf32>
    %c2_i32 = arith.constant 2 : i32
    %97 = vector.broadcast %c2_i32 : i32 to vector<4x1xi32>
    %98 = arith.cmpi eq, %2, %97 : vector<4x1xi32>
    %99 = vector.shape_cast %98 : vector<4x1xi1> to vector<4x1xi1>
    %100 = vector.broadcast %99 : vector<4x1xi1> to vector<4x128xi1>
    %101 = arith.select %100, %96, %92 : vector<4x128xi1>, vector<4x128xf32>
    %102 = arith.truncf %96 : vector<4x128xf32> to vector<4x128xbf16>
    %cst_22 = arith.constant dense<0.000000e+00> : vector<4x128xf32>
    %103 = tpu.matmul %102, %72, %cst_22 {dimension_numbers = #tpu.dot_dimension_numbers<[1], [0], [0], [1], [0, 0, 1, 1], [], []>} : vector<4x128xbf16>, vector<128x128xbf16>, vector<4x128xf32> -> vector<4x128xf32>
    %104 = arith.addf %38, %103 : vector<4x128xf32>
    %105 = math.tanh %104 : vector<4x128xf32>
    %c3_i32 = arith.constant 3 : i32
    %106 = vector.broadcast %c3_i32 : i32 to vector<4x1xi32>
    %107 = arith.cmpi eq, %2, %106 : vector<4x1xi32>
    %108 = vector.shape_cast %107 : vector<4x1xi1> to vector<4x1xi1>
    %109 = vector.broadcast %108 : vector<4x1xi1> to vector<4x128xi1>
    %110 = arith.select %109, %105, %101 : vector<4x128xi1>, vector<4x128xf32>
    %111 = arith.truncf %105 : vector<4x128xf32> to vector<4x128xbf16>
    %cst_23 = arith.constant dense<0.000000e+00> : vector<4x128xf32>
    %112 = tpu.matmul %111, %72, %cst_23 {dimension_numbers = #tpu.dot_dimension_numbers<[1], [0], [0], [1], [0, 0, 1, 1], [], []>} : vector<4x128xbf16>, vector<128x128xbf16>, vector<4x128xf32> -> vector<4x128xf32>
    %113 = arith.addf %46, %112 : vector<4x128xf32>
    %114 = math.tanh %113 : vector<4x128xf32>
    %c4_i32 = arith.constant 4 : i32
    %115 = vector.broadcast %c4_i32 : i32 to vector<4x1xi32>
    %116 = arith.cmpi eq, %2, %115 : vector<4x1xi32>
    %117 = vector.shape_cast %116 : vector<4x1xi1> to vector<4x1xi1>
    %118 = vector.broadcast %117 : vector<4x1xi1> to vector<4x128xi1>
    %119 = arith.select %118, %114, %110 : vector<4x128xi1>, vector<4x128xf32>
    %120 = arith.truncf %114 : vector<4x128xf32> to vector<4x128xbf16>
    %cst_24 = arith.constant dense<0.000000e+00> : vector<4x128xf32>
    %121 = tpu.matmul %120, %72, %cst_24 {dimension_numbers = #tpu.dot_dimension_numbers<[1], [0], [0], [1], [0, 0, 1, 1], [], []>} : vector<4x128xbf16>, vector<128x128xbf16>, vector<4x128xf32> -> vector<4x128xf32>
    %122 = arith.addf %54, %121 : vector<4x128xf32>
    %123 = math.tanh %122 : vector<4x128xf32>
    %c5_i32 = arith.constant 5 : i32
    %124 = vector.broadcast %c5_i32 : i32 to vector<4x1xi32>
    %125 = arith.cmpi eq, %2, %124 : vector<4x1xi32>
    %126 = vector.shape_cast %125 : vector<4x1xi1> to vector<4x1xi1>
    %127 = vector.broadcast %126 : vector<4x1xi1> to vector<4x128xi1>
    %128 = arith.select %127, %123, %119 : vector<4x128xi1>, vector<4x128xf32>
    %129 = arith.truncf %123 : vector<4x128xf32> to vector<4x128xbf16>
    %cst_25 = arith.constant dense<0.000000e+00> : vector<4x128xf32>
    %130 = tpu.matmul %129, %72, %cst_25 {dimension_numbers = #tpu.dot_dimension_numbers<[1], [0], [0], [1], [0, 0, 1, 1], [], []>} : vector<4x128xbf16>, vector<128x128xbf16>, vector<4x128xf32> -> vector<4x128xf32>
    %131 = arith.addf %62, %130 : vector<4x128xf32>
    %132 = math.tanh %131 : vector<4x128xf32>
    %c6_i32 = arith.constant 6 : i32
    %133 = vector.broadcast %c6_i32 : i32 to vector<4x1xi32>
    %134 = arith.cmpi eq, %2, %133 : vector<4x1xi32>
    %135 = vector.shape_cast %134 : vector<4x1xi1> to vector<4x1xi1>
    %136 = vector.broadcast %135 : vector<4x1xi1> to vector<4x128xi1>
    %137 = arith.select %136, %132, %128 : vector<4x128xi1>, vector<4x128xf32>
    %138 = arith.truncf %132 : vector<4x128xf32> to vector<4x128xbf16>
    %cst_26 = arith.constant dense<0.000000e+00> : vector<4x128xf32>
    %139 = tpu.matmul %138, %72, %cst_26 {dimension_numbers = #tpu.dot_dimension_numbers<[1], [0], [0], [1], [0, 0, 1, 1], [], []>} : vector<4x128xbf16>, vector<128x128xbf16>, vector<4x128xf32> -> vector<4x128xf32>
    %140 = arith.addf %70, %139 : vector<4x128xf32>
    %141 = math.tanh %140 : vector<4x128xf32>
    %c7_i32 = arith.constant 7 : i32
    %142 = vector.broadcast %c7_i32 : i32 to vector<4x1xi32>
    %143 = arith.cmpi eq, %2, %142 : vector<4x1xi32>
    %144 = vector.shape_cast %143 : vector<4x1xi1> to vector<4x1xi1>
    %145 = vector.broadcast %144 : vector<4x1xi1> to vector<4x128xi1>
    %146 = arith.select %145, %141, %137 : vector<4x128xi1>, vector<4x128xf32>
    %147 = vector.extract_strided_slice %146 {offsets = [0, 0], sizes = [4, 32], strides = [1, 1]} : vector<4x128xf32> to vector<4x32xf32>
    %c0_27 = arith.constant 0 : index
    %c0_28 = arith.constant 0 : index
    %c0_29 = arith.constant 0 : index
    %148 = vector.load %arg6[%c0_27, %c0_28, %c0_29] : memref<2x4x32xf32, #tpu.memory_space<vmem>>, vector<1x4x32xf32>
    %149 = vector.shape_cast %148 : vector<1x4x32xf32> to vector<4x32xf32>
    %150 = vector.shape_cast %147 : vector<4x32xf32> to vector<1x4x32xf32>
    tpu.vector_store %arg6[%c0_27, %c0_28, %c0_29], %150 {strides = array<i32>} : memref<2x4x32xf32, #tpu.memory_space<vmem>>, vector<1x4x32xf32>,
    %c1_30 = arith.constant 1 : index
    %c0_31 = arith.constant 0 : index
    %151 = vector.load %arg4[%c1_30, %c0_31] : memref<3x128xf32, #tpu.memory_space<vmem>>, vector<1x128xf32>
    %c0_32 = arith.constant 0 : index
    %c0_33 = arith.constant 0 : index
    %c0_34 = arith.constant 0 : index
    %152 = vector.load %arg3[%c0_32, %c0_33, %c0_34] : memref<4x128x128xbf16, #tpu.memory_space<vmem>>, vector<1x128x128xbf16>
    %153 = vector.shape_cast %152 : vector<1x128x128xbf16> to vector<128x128xbf16>
    %154 = tpu.concatenate %78, %87, %96, %105, %114, %123, %132, %141 in 0 : vector<4x128xf32>, vector<4x128xf32>, vector<4x128xf32>, vector<4x128xf32>, vector<4x128xf32>, vector<4x128xf32>, vector<4x128xf32>, vector<4x128xf32> -> vector<32x128xf32>
    %155 = arith.truncf %154 : vector<32x128xf32> to vector<32x128xbf16>
    %cst_35 = arith.constant dense<0.000000e+00> : vector<32x128xf32>
    %156 = tpu.matmul %155, %153, %cst_35 {dimension_numbers = #tpu.dot_dimension_numbers<[1], [0], [0], [1], [0, 0, 1, 1], [], []>} : vector<32x128xbf16>, vector<128x128xbf16>, vector<32x128xf32> -> vector<32x128xf32>
    %157 = vector.broadcast %151 : vector<1x128xf32> to vector<32x128xf32>
    %158 = arith.addf %156, %157 : vector<32x128xf32>
    %159 = vector.extract_strided_slice %158 {offsets = [0, 0], sizes = [4, 128], strides = [1, 1]} : vector<32x128xf32> to vector<4x128xf32>
    %160 = vector.extract_strided_slice %158 {offsets = [4, 0], sizes = [4, 128], strides = [1, 1]} : vector<32x128xf32> to vector<4x128xf32>
    %161 = vector.extract_strided_slice %158 {offsets = [8, 0], sizes = [4, 128], strides = [1, 1]} : vector<32x128xf32> to vector<4x128xf32>
    %162 = vector.extract_strided_slice %158 {offsets = [12, 0], sizes = [4, 128], strides = [1, 1]} : vector<32x128xf32> to vector<4x128xf32>
    %163 = vector.extract_strided_slice %158 {offsets = [16, 0], sizes = [4, 128], strides = [1, 1]} : vector<32x128xf32> to vector<4x128xf32>
    %164 = vector.extract_strided_slice %158 {offsets = [20, 0], sizes = [4, 128], strides = [1, 1]} : vector<32x128xf32> to vector<4x128xf32>
    %165 = vector.extract_strided_slice %158 {offsets = [24, 0], sizes = [4, 128], strides = [1, 1]} : vector<32x128xf32> to vector<4x128xf32>
    %166 = vector.extract_strided_slice %158 {offsets = [28, 0], sizes = [4, 128], strides = [1, 1]} : vector<32x128xf32> to vector<4x128xf32>
    %c2 = arith.constant 2 : index
    %c0_36 = arith.constant 0 : index
    %c0_37 = arith.constant 0 : index
    %167 = vector.load %arg3[%c2, %c0_36, %c0_37] : memref<4x128x128xbf16, #tpu.memory_space<vmem>>, vector<1x128x128xbf16>
    %168 = vector.shape_cast %167 : vector<1x128x128xbf16> to vector<128x128xbf16>
    %cst_38 = arith.constant 0.000000e+00 : f32
    %169 = vector.broadcast %cst_38 : f32 to vector<4x128xf32>
    %cst_39 = arith.constant 0.000000e+00 : f32
    %170 = vector.broadcast %cst_39 : f32 to vector<4x128xf32>
    %171 = arith.truncf %169 : vector<4x128xf32> to vector<4x128xbf16>
    %cst_40 = arith.constant dense<0.000000e+00> : vector<4x128xf32>
    %172 = tpu.matmul %171, %168, %cst_40 {dimension_numbers = #tpu.dot_dimension_numbers<[1], [0], [0], [1], [0, 0, 1, 1], [], []>} : vector<4x128xbf16>, vector<128x128xbf16>, vector<4x128xf32> -> vector<4x128xf32>
    %173 = arith.addf %159, %172 : vector<4x128xf32>
    %174 = math.tanh %173 : vector<4x128xf32>
    %c0_i32_41 = arith.constant 0 : i32
    %175 = vector.broadcast %c0_i32_41 : i32 to vector<4x1xi32>
    %176 = arith.cmpi eq, %2, %175 : vector<4x1xi32>
    %177 = vector.shape_cast %176 : vector<4x1xi1> to vector<4x1xi1>
    %178 = vector.broadcast %177 : vector<4x1xi1> to vector<4x128xi1>
    %179 = arith.select %178, %174, %170 : vector<4x128xi1>, vector<4x128xf32>
    %180 = arith.truncf %174 : vector<4x128xf32> to vector<4x128xbf16>
    %cst_42 = arith.constant dense<0.000000e+00> : vector<4x128xf32>
    %181 = tpu.matmul %180, %168, %cst_42 {dimension_numbers = #tpu.dot_dimension_numbers<[1], [0], [0], [1], [0, 0, 1, 1], [], []>} : vector<4x128xbf16>, vector<128x128xbf16>, vector<4x128xf32> -> vector<4x128xf32>
    %182 = arith.addf %160, %181 : vector<4x128xf32>
    %183 = math.tanh %182 : vector<4x128xf32>
    %c1_i32_43 = arith.constant 1 : i32
    %184 = vector.broadcast %c1_i32_43 : i32 to vector<4x1xi32>
    %185 = arith.cmpi eq, %2, %184 : vector<4x1xi32>
    %186 = vector.shape_cast %185 : vector<4x1xi1> to vector<4x1xi1>
    %187 = vector.broadcast %186 : vector<4x1xi1> to vector<4x128xi1>
    %188 = arith.select %187, %183, %179 : vector<4x128xi1>, vector<4x128xf32>
    %189 = arith.truncf %183 : vector<4x128xf32> to vector<4x128xbf16>
    %cst_44 = arith.constant dense<0.000000e+00> : vector<4x128xf32>
    %190 = tpu.matmul %189, %168, %cst_44 {dimension_numbers = #tpu.dot_dimension_numbers<[1], [0], [0], [1], [0, 0, 1, 1], [], []>} : vector<4x128xbf16>, vector<128x128xbf16>, vector<4x128xf32> -> vector<4x128xf32>
    %191 = arith.addf %161, %190 : vector<4x128xf32>
    %192 = math.tanh %191 : vector<4x128xf32>
    %c2_i32_45 = arith.constant 2 : i32
    %193 = vector.broadcast %c2_i32_45 : i32 to vector<4x1xi32>
    %194 = arith.cmpi eq, %2, %193 : vector<4x1xi32>
    %195 = vector.shape_cast %194 : vector<4x1xi1> to vector<4x1xi1>
    %196 = vector.broadcast %195 : vector<4x1xi1> to vector<4x128xi1>
    %197 = arith.select %196, %192, %188 : vector<4x128xi1>, vector<4x128xf32>
    %198 = arith.truncf %192 : vector<4x128xf32> to vector<4x128xbf16>
    %cst_46 = arith.constant dense<0.000000e+00> : vector<4x128xf32>
    %199 = tpu.matmul %198, %168, %cst_46 {dimension_numbers = #tpu.dot_dimension_numbers<[1], [0], [0], [1], [0, 0, 1, 1], [], []>} : vector<4x128xbf16>, vector<128x128xbf16>, vector<4x128xf32> -> vector<4x128xf32>
    %200 = arith.addf %162, %199 : vector<4x128xf32>
    %201 = math.tanh %200 : vector<4x128xf32>
    %c3_i32_47 = arith.constant 3 : i32
    %202 = vector.broadcast %c3_i32_47 : i32 to vector<4x1xi32>
    %203 = arith.cmpi eq, %2, %202 : vector<4x1xi32>
    %204 = vector.shape_cast %203 : vector<4x1xi1> to vector<4x1xi1>
    %205 = vector.broadcast %204 : vector<4x1xi1> to vector<4x128xi1>
    %206 = arith.select %205, %201, %197 : vector<4x128xi1>, vector<4x128xf32>
    %207 = arith.truncf %201 : vector<4x128xf32> to vector<4x128xbf16>
    %cst_48 = arith.constant dense<0.000000e+00> : vector<4x128xf32>
    %208 = tpu.matmul %207, %168, %cst_48 {dimension_numbers = #tpu.dot_dimension_numbers<[1], [0], [0], [1], [0, 0, 1, 1], [], []>} : vector<4x128xbf16>, vector<128x128xbf16>, vector<4x128xf32> -> vector<4x128xf32>
    %209 = arith.addf %163, %208 : vector<4x128xf32>
    %210 = math.tanh %209 : vector<4x128xf32>
    %c4_i32_49 = arith.constant 4 : i32
    %211 = vector.broadcast %c4_i32_49 : i32 to vector<4x1xi32>
    %212 = arith.cmpi eq, %2, %211 : vector<4x1xi32>
    %213 = vector.shape_cast %212 : vector<4x1xi1> to vector<4x1xi1>
    %214 = vector.broadcast %213 : vector<4x1xi1> to vector<4x128xi1>
    %215 = arith.select %214, %210, %206 : vector<4x128xi1>, vector<4x128xf32>
    %216 = arith.truncf %210 : vector<4x128xf32> to vector<4x128xbf16>
    %cst_50 = arith.constant dense<0.000000e+00> : vector<4x128xf32>
    %217 = tpu.matmul %216, %168, %cst_50 {dimension_numbers = #tpu.dot_dimension_numbers<[1], [0], [0], [1], [0, 0, 1, 1], [], []>} : vector<4x128xbf16>, vector<128x128xbf16>, vector<4x128xf32> -> vector<4x128xf32>
    %218 = arith.addf %164, %217 : vector<4x128xf32>
    %219 = math.tanh %218 : vector<4x128xf32>
    %c5_i32_51 = arith.constant 5 : i32
    %220 = vector.broadcast %c5_i32_51 : i32 to vector<4x1xi32>
    %221 = arith.cmpi eq, %2, %220 : vector<4x1xi32>
    %222 = vector.shape_cast %221 : vector<4x1xi1> to vector<4x1xi1>
    %223 = vector.broadcast %222 : vector<4x1xi1> to vector<4x128xi1>
    %224 = arith.select %223, %219, %215 : vector<4x128xi1>, vector<4x128xf32>
    %225 = arith.truncf %219 : vector<4x128xf32> to vector<4x128xbf16>
    %cst_52 = arith.constant dense<0.000000e+00> : vector<4x128xf32>
    %226 = tpu.matmul %225, %168, %cst_52 {dimension_numbers = #tpu.dot_dimension_numbers<[1], [0], [0], [1], [0, 0, 1, 1], [], []>} : vector<4x128xbf16>, vector<128x128xbf16>, vector<4x128xf32> -> vector<4x128xf32>
    %227 = arith.addf %165, %226 : vector<4x128xf32>
    %228 = math.tanh %227 : vector<4x128xf32>
    %c6_i32_53 = arith.constant 6 : i32
    %229 = vector.broadcast %c6_i32_53 : i32 to vector<4x1xi32>
    %230 = arith.cmpi eq, %2, %229 : vector<4x1xi32>
    %231 = vector.shape_cast %230 : vector<4x1xi1> to vector<4x1xi1>
    %232 = vector.broadcast %231 : vector<4x1xi1> to vector<4x128xi1>
    %233 = arith.select %232, %228, %224 : vector<4x128xi1>, vector<4x128xf32>
    %234 = arith.truncf %228 : vector<4x128xf32> to vector<4x128xbf16>
    %cst_54 = arith.constant dense<0.000000e+00> : vector<4x128xf32>
    %235 = tpu.matmul %234, %168, %cst_54 {dimension_numbers = #tpu.dot_dimension_numbers<[1], [0], [0], [1], [0, 0, 1, 1], [], []>} : vector<4x128xbf16>, vector<128x128xbf16>, vector<4x128xf32> -> vector<4x128xf32>
    %236 = arith.addf %166, %235 : vector<4x128xf32>
    %237 = math.tanh %236 : vector<4x128xf32>
    %c7_i32_55 = arith.constant 7 : i32
    %238 = vector.broadcast %c7_i32_55 : i32 to vector<4x1xi32>
    %239 = arith.cmpi eq, %2, %238 : vector<4x1xi32>
    %240 = vector.shape_cast %239 : vector<4x1xi1> to vector<4x1xi1>
    %241 = vector.broadcast %240 : vector<4x1xi1> to vector<4x128xi1>
    %242 = arith.select %241, %237, %233 : vector<4x128xi1>, vector<4x128xf32>
    %243 = vector.extract_strided_slice %242 {offsets = [0, 0], sizes = [4, 32], strides = [1, 1]} : vector<4x128xf32> to vector<4x32xf32>
    %c1_56 = arith.constant 1 : index
    %c0_57 = arith.constant 0 : index
    %c0_58 = arith.constant 0 : index
    %244 = vector.load %arg6[%c1_56, %c0_57, %c0_58] : memref<2x4x32xf32, #tpu.memory_space<vmem>>, vector<1x4x32xf32>
    %245 = vector.shape_cast %244 : vector<1x4x32xf32> to vector<4x32xf32>
    %246 = vector.shape_cast %243 : vector<4x32xf32> to vector<1x4x32xf32>
    tpu.vector_store %arg6[%c1_56, %c0_57, %c0_58], %246 {strides = array<i32>} : memref<2x4x32xf32, #tpu.memory_space<vmem>>, vector<1x4x32xf32>,
    %c3 = arith.constant 3 : index
    %c0_59 = arith.constant 0 : index
    %c0_60 = arith.constant 0 : index
    %247 = vector.load %arg3[%c3, %c0_59, %c0_60] : memref<4x128x128xbf16, #tpu.memory_space<vmem>>, vector<1x128x128xbf16>
    %248 = vector.shape_cast %247 : vector<1x128x128xbf16> to vector<128x128xbf16>
    %c2_61 = arith.constant 2 : index
    %c0_62 = arith.constant 0 : index
    %249 = vector.load %arg4[%c2_61, %c0_62] : memref<3x128xf32, #tpu.memory_space<vmem>>, vector<1x128xf32>
    %250 = arith.truncf %242 : vector<4x128xf32> to vector<4x128xbf16>
    %cst_63 = arith.constant dense<0.000000e+00> : vector<4x128xf32>
    %251 = tpu.matmul %250, %248, %cst_63 {dimension_numbers = #tpu.dot_dimension_numbers<[1], [0], [0], [1], [0, 0, 1, 1], [], []>} : vector<4x128xbf16>, vector<128x128xbf16>, vector<4x128xf32> -> vector<4x128xf32>
    %252 = vector.broadcast %249 : vector<1x128xf32> to vector<4x128xf32>
    %253 = arith.addf %251, %252 : vector<4x128xf32>
    %254 = tpu.iota {dimensions = array<i32: 1>} : vector<4x128xi32>
    %c8_i32 = arith.constant 8 : i32
    %255 = vector.broadcast %c8_i32 : i32 to vector<4x128xi32>
    %256 = arith.cmpi slt, %254, %255 : vector<4x128xi32>
    %cst_64 = arith.constant -1.000000e+30 : f32
    %257 = vector.broadcast %cst_64 : f32 to vector<4x128xf32>
    %258 = arith.select %256, %253, %257 : vector<4x128xi1>, vector<4x128xf32>
    %cst_65 = arith.constant dense<0xFF800000> : vector<4xf32>
    %259 = vector.multi_reduction <maximumf>, %258, %cst_65 [1] : vector<4x128xf32> to vector<4xf32>
    %260 = vector.shape_cast %259 : vector<4xf32> to vector<4x1xf32>
    %261 = vector.broadcast %260 : vector<4x1xf32> to vector<4x128xf32>
    %262 = arith.subf %258, %261 : vector<4x128xf32>
    %263 = math.exp %262 : vector<4x128xf32>
    %cst_66 = arith.constant dense<0.000000e+00> : vector<4xf32>
    %264 = vector.multi_reduction <add>, %263, %cst_66 [1] : vector<4x128xf32> to vector<4xf32>
    %265 = vector.shape_cast %264 : vector<4xf32> to vector<4x1xf32>
    %266 = math.log %265 : vector<4x1xf32>
    %267 = vector.broadcast %266 : vector<4x1xf32> to vector<4x128xf32>
    %268 = arith.subf %262, %267 : vector<4x128xf32>
    %269 = vector.extract_strided_slice %268 {offsets = [0, 0], sizes = [4, 8], strides = [1, 1]} : vector<4x128xf32> to vector<4x8xf32>
    %c0_67 = arith.constant 0 : index
    %c0_68 = arith.constant 0 : index
    %270 = vector.load %arg5[%c0_67, %c0_68] : memref<4x8xf32, #tpu.memory_space<vmem>>, vector<4x8xf32>
    tpu.vector_store %arg5[%c0_67, %c0_68], %269 {strides = array<i32>} : memref<4x8xf32, #tpu.memory_space<vmem>>, vector<4x8xf32>,
    return
  }
}

</mosaic_0001>

<llo_original>
// kernel: textclass_forward.1
$region0: #{textclass_forward.1}
  #allocation0 [shape = 'u32[]', space=smem, size = 0x4, offset = 0x4, fixed_abs, tag = 'smem constant byte address 0x4 - core index']
  #allocation1 [shape = 'u32[144,128]{1,0:T(1,128)}', space=vmem, size = 0x12000, scoped, tag = 'internal scratch']
  %s0 = inlined_call_operand.vmem [shape: s32[4,1], index: 0, kind: input, shape index: {}]
  %s1 = inlined_call_operand.vmem [shape: s32[4,8], index: 1, kind: input, shape index: {}]
  %s2 = inlined_call_operand.hbm [shape: f32[128,128], index: 2, kind: input, shape index: {}]
  %s3 = inlined_call_operand.hbm [shape: bf16[4,128,128], index: 3, kind: input, shape index: {}]
  %s4 = inlined_call_operand.vmem [shape: f32[3,128], index: 4, kind: input, shape index: {}]
  %s5 = inlined_call_operand.hbm [shape: f32[4,8], index: 5, kind: output, shape index: {0}]
  %s6 = inlined_call_operand.hbm [shape: f32[2,4,32], index: 6, kind: output, shape index: {1}]
  %7 = xla_tuple %s5, %s6
  %s8 = sld [smem:[#allocation0]]
  $region46: #{textclass_forward.1} parent=0
    _
  %s10 = ssub.s32 1, %s8
  %s11 = scalar_select 0, %s10, %s8
  $region1: #{textclass_forward.1} parent=0
    #allocation2 [shape = 'u8[65536]{0}', space=vmem, size = 0x10000, scoped, tag = 'input window, operand 2, single buffered']
    #allocation3 [shape = 's32[1]{0}', space=sflag, size = 0x4, scoped, tag = 'scoped memory for textclass_forward.1']
    #allocation4 [shape = 's32[1]{0}', space=sflag, size = 0x4, scoped, tag = 'scoped memory for textclass_forward.1']
    #allocation5 [shape = 'u8[131072]{0}', space=vmem, size = 0x20000, scoped, tag = 'input window, operand 3, single buffered']
    #allocation6 [shape = 's32[1]{0}', space=sflag, size = 0x4, scoped, tag = 'scoped memory for textclass_forward.1']
    #allocation7 [shape = 'u8[2048]{0}', space=vmem, size = 0x800, scoped, tag = 'output window, operand 0, single buffered']
    #allocation8 [shape = 'u8[4096]{0}', space=vmem, size = 0x1000, scoped, tag = 'output window, operand 1, single buffered']
    #allocation9 [shape = 's32[1]{0}', space=sflag, size = 0x4, scoped, tag = 'scoped memory for textclass_forward.1']
    %12 = vsyncpa [#allocation3], 0
    %13 = vsyncpa [#allocation6], 0
    %14 = vsyncpa [#allocation4], 0
    %15 = vsyncpa [#allocation9], 0
    // Predicated region
    $region2: #{textclass_forward.1} parent=1 // pred_check
      _
    $region3: #{textclass_forward.1} parent=1 // pred_check_branch
      %17 = sbr.rel (0) target = $region5
    $region4: #{textclass_forward.1} parent=1 // pred_region
      _
    $region5: #{textclass_forward.1} parent=1 // pred_fallthru
      _
    // Predicated region
    $region6: #{textclass_forward.1} parent=1 // pred_check
      _
    $region7: #{textclass_forward.1} parent=1 // pred_check_branch
      %19 = sbr.rel (0) target = $region9
    $region8: #{textclass_forward.1} parent=1 // pred_region
      _
    $region9: #{textclass_forward.1} parent=1 // pred_fallthru
      _
    // Predicated region
    $region10: #{textclass_forward.1} parent=1 // pred_check
      _
    $region11: #{textclass_forward.1} parent=1 // pred_check_branch
      %21 = sbr.rel (0) target = $region13
    $region12: #{textclass_forward.1} parent=1 // pred_region
      %s23 = ssub.s32 2048, 2048
      %24 = vsyncadd [#allocation3], %s23
      %s25 = sshll.u32 [#allocation2], 4
      %s26 = int_to_ptr.vmem [resolvable:$true] %s25
      %31 = dma.hbm_to_vmem [thread:$0]  %s2, 2048, %s26, [#allocation3], 128, 128, 8
    $region13: #{textclass_forward.1} parent=1 // pred_fallthru
      _
    // Predicated region
    $region14: #{textclass_forward.1} parent=1 // pred_check
      _
    $region15: #{textclass_forward.1} parent=1 // pred_check_branch
      %33 = sbr.rel (0) target = $region17
    $region16: #{textclass_forward.1} parent=1 // pred_region
      %s35 = ssub.s32 4096, 4096
      %36 = vsyncadd [#allocation6], %s35
      %s37 = sshll.u32 [#allocation5], 4
      %s38 = int_to_ptr.vmem [resolvable:$true] %s37
      %43 = dma.hbm_to_vmem [thread:$0]  %s3, 4096, %s38, [#allocation6], 64, 64, 4
    $region17: #{textclass_forward.1} parent=1 // pred_fallthru
      _
    // Predicated region
    $region18: #{textclass_forward.1} parent=1 // pred_check
      _
    $region19: #{textclass_forward.1} parent=1 // pred_check_branch
      %45 = sbr.rel (0) target = $region21
    $region20: #{textclass_forward.1} parent=1 // pred_region
      _
    $region21: #{textclass_forward.1} parent=1 // pred_fallthru
      _
    // Predicated region
    $region22: #{textclass_forward.1} parent=1 // pred_check
      _
    $region23: #{textclass_forward.1} parent=1 // pred_check_branch
      %47 = sbr.rel (0) target = $region25
    $region24: #{textclass_forward.1} parent=1 // pred_region
      %48 = dma.done [#allocation3], 2048
    $region25: #{textclass_forward.1} parent=1 // pred_fallthru
      _
    // Predicated region
    $region26: #{textclass_forward.1} parent=1 // pred_check
      _
    $region27: #{textclass_forward.1} parent=1 // pred_check_branch
      %50 = sbr.rel (0) target = $region29
    $region28: #{textclass_forward.1} parent=1 // pred_region
      %51 = dma.done [#allocation6], 4096
    $region29: #{textclass_forward.1} parent=1 // pred_fallthru
      _
    %v53 = vld [vmem:[%s0] sm:$0xf]
    %v54 = vsub.s32 %v53, 1
    %v55 = vld [vmem:[%s1] sm:$0xf]
    %v56 = vlaneseq
    %v57 = vand.u32 %v56, 127
    %v58 = vld [vmem:[#allocation2] sm:$0xff]
    %v59 = vld [vmem:[#allocation2 + $0x8] sm:$0xff]
    %v60 = vld [vmem:[#allocation2 + $0x10] sm:$0xff]
    %v61 = vld [vmem:[#allocation2 + $0x18] sm:$0xff]
    %v62 = vld [vmem:[#allocation2 + $0x20] sm:$0xff]
    %v63 = vld [vmem:[#allocation2 + $0x28] sm:$0xff]
    %v64 = vld [vmem:[#allocation2 + $0x30] sm:$0xff]
    %v65 = vld [vmem:[#allocation2 + $0x38] sm:$0xff]
    %v66 = vld [vmem:[#allocation2 + $0x40] sm:$0xff]
    %v67 = vld [vmem:[#allocation2 + $0x48] sm:$0xff]
    %v68 = vld [vmem:[#allocation2 + $0x50] sm:$0xff]
    %v69 = vld [vmem:[#allocation2 + $0x58] sm:$0xff]
    %v70 = vld [vmem:[#allocation2 + $0x60] sm:$0xff]
    %v71 = vld [vmem:[#allocation2 + $0x68] sm:$0xff]
    %v72 = vld [vmem:[#allocation2 + $0x70] sm:$0xff]
    %v73 = vld [vmem:[#allocation2 + $0x78] sm:$0xff]
    %v74 = vld [vmem:[%s4] sm:$0x1]
    %75 = vset.pattern.permute.xlu0 0
    %76 = vperm.xlu0 %75, %v55
    %v77 = vpop.permute.xlu0 %76
    %vm78 = vcmp.eq.s32.totalorder %v77, %v57
    %v79 = vsel %vm78, 1, 0
    %v80 = vcvt.s32.f32 %v79
    %v81 = vlaneseq
    %v82 = vshrl.u32 %v81, 7
    %v83 = vsub.s32 0, %v82
    %v84 = vrot.slane %v74, %v83
    %85 = vmatprep.subr.mxu0 0.0
    %86 = vmatpush1.msra.mxu0 %v58
    %87 = vmatprep.subr.mxu0 0.0
    %88 = vmatpush1.msra.mxu0 %v59
    %89 = vmatprep.subr.mxu0 0.0
    %90 = vmatpush1.msra.mxu0 %v60
    %91 = vmatprep.subr.mxu0 0.0
    %92 = vmatpush1.msra.mxu0 %v61
    %93 = vmatprep.subr.mxu0 0.0
    %94 = vmatpush1.msra.mxu0 %v62
    %95 = vmatprep.subr.mxu0 0.0
    %96 = vmatpush1.msra.mxu0 %v63
    %97 = vmatprep.subr.mxu0 0.0
    %98 = vmatpush1.msra.mxu0 %v64
    %99 = vmatprep.subr.mxu0 0.0
    %100 = vmatpush1.msra.mxu0 %v65
    %101 = vmatprep.subr.mxu0 0.0
    %102 = vmatpush1.msra.mxu0 %v66
    %103 = vmatprep.subr.mxu0 0.0
    %104 = vmatpush1.msra.mxu0 %v67
    %105 = vmatprep.subr.mxu0 0.0
    %106 = vmatpush1.msra.mxu0 %v68
    %107 = vmatprep.subr.mxu0 0.0
    %108 = vmatpush1.msra.mxu0 %v69
    %109 = vmatprep.subr.mxu0 0.0
    %110 = vmatpush1.msra.mxu0 %v70
    %111 = vmatprep.subr.mxu0 0.0
    %112 = vmatpush1.msra.mxu0 %v71
    %113 = vmatprep.subr.mxu0 0.0
    %114 = vmatpush1.msra.mxu0 %v72
    %115 = vmatprep.subr.mxu0 0.0
    %116 = vmatpush1.msra.mxu0 %v73
    %117 = vmatprep.subr.mxu0 0.0
    %118 = vmatpush1.msra.mxu0 0.0
    %119 = vmatprep.subr.mxu0 0.0
    %120 = vmatpush1.msra.mxu0 0.0
    %121 = vmatprep.subr.mxu0 0.0
    %122 = vmatpush1.msra.mxu0 0.0
    %123 = vmatprep.subr.mxu0 0.0
    %124 = vmatpush1.msra.mxu0 0.0
    %125 = vmatprep.subr.mxu0 0.0
    %126 = vmatpush1.msra.mxu0 0.0
    %127 = vmatprep.subr.mxu0 0.0
    %128 = vmatpush1.msra.mxu0 0.0
    %129 = vmatprep.subr.mxu0 0.0
    %130 = vmatpush1.msra.mxu0 0.0
    %131 = vmatprep.subr.mxu0 0.0
    %132 = vmatpush1.msra.mxu0 0.0
    %133 = vmatprep.subr.mxu0 0.0
    %134 = vmatpush1.msra.mxu0 0.0
    %135 = vmatprep.subr.mxu0 0.0
    %136 = vmatpush1.msra.mxu0 0.0
    %137 = vmatprep.subr.mxu0 0.0
    %138 = vmatpush1.msra.mxu0 0.0
    %139 = vmatprep.subr.mxu0 0.0
    %140 = vmatpush1.msra.mxu0 0.0
    %141 = vmatprep.subr.mxu0 0.0
    %142 = vmatpush1.msra.mxu0 0.0
    %143 = vmatprep.subr.mxu0 0.0
    %144 = vmatpush1.msra.mxu0 0.0
    %145 = vmatprep.subr.mxu0 0.0
    %146 = vmatpush1.msra.mxu0 0.0
    %147 = vmatprep.subr.mxu0 0.0
    %148 = vmatpush1.msra.mxu0 0.0
    %149 = vmatprep.mubr.f32.mxu0 0.0
    %150 = vmatmul.mubr.f32.gmra.mrb[0].mxu0 %v80
    %v151 = vpop.f32.mrb[0].mxu0
    %v152 = vadd.f32 %v84, %v151
    %v153 = vpop.f32.mrb[0].mxu0
    %154 = vdwg.mxu0
    %155 = vset.pattern.permute.xlu0 1
    %156 = vperm.xlu0 %155, %v55
    %v157 = vpop.permute.xlu0 %156
    %vm158 = vcmp.eq.s32.totalorder %v157, %v57
    %v159 = vsel %vm158, 1, 0
    %v160 = vcvt.s32.f32 %v159
    %161 = vmatprep.subr.mxu0 0.0
    %162 = vmatpush1.msra.mxu0 %v58
    %163 = vmatprep.subr.mxu0 0.0
    %164 = vmatpush1.msra.mxu0 %v59
    %165 = vmatprep.subr.mxu0 0.0
    %166 = vmatpush1.msra.mxu0 %v60
    %167 = vmatprep.subr.mxu0 0.0
    %168 = vmatpush1.msra.mxu0 %v61
    %169 = vmatprep.subr.mxu0 0.0
    %170 = vmatpush1.msra.mxu0 %v62
    %171 = vmatprep.subr.mxu0 0.0
    %172 = vmatpush1.msra.mxu0 %v63
    %173 = vmatprep.subr.mxu0 0.0
    %174 = vmatpush1.msra.mxu0 %v64
    %175 = vmatprep.subr.mxu0 0.0
    %176 = vmatpush1.msra.mxu0 %v65
    %177 = vmatprep.subr.mxu0 0.0
    %178 = vmatpush1.msra.mxu0 %v66
    %179 = vmatprep.subr.mxu0 0.0
    %180 = vmatpush1.msra.mxu0 %v67
    %181 = vmatprep.subr.mxu0 0.0
    %182 = vmatpush1.msra.mxu0 %v68
    %183 = vmatprep.subr.mxu0 0.0
    %184 = vmatpush1.msra.mxu0 %v69
    %185 = vmatprep.subr.mxu0 0.0
    %186 = vmatpush1.msra.mxu0 %v70
    %187 = vmatprep.subr.mxu0 0.0
    %188 = vmatpush1.msra.mxu0 %v71
    %189 = vmatprep.subr.mxu0 0.0
    %190 = vmatpush1.msra.mxu0 %v72
    %191 = vmatprep.subr.mxu0 0.0
    %192 = vmatpush1.msra.mxu0 %v73
    %193 = vmatprep.subr.mxu0 0.0
    %194 = vmatpush1.msra.mxu0 0.0
    %195 = vmatprep.subr.mxu0 0.0
    %196 = vmatpush1.msra.mxu0 0.0
    %197 = vmatprep.subr.mxu0 0.0
    %198 = vmatpush1.msra.mxu0 0.0
    %199 = vmatprep.subr.mxu0 0.0
    %200 = vmatpush1.msra.mxu0 0.0
    %201 = vmatprep.subr.mxu0 0.0
    %202 = vmatpush1.msra.mxu0 0.0
    %203 = vmatprep.subr.mxu0 0.0
    %204 = vmatpush1.msra.mxu0 0.0
    %205 = vmatprep.subr.mxu0 0.0
    %206 = vmatpush1.msra.mxu0 0.0
    %207 = vmatprep.subr.mxu0 0.0
    %208 = vmatpush1.msra.mxu0 0.0
    %209 = vmatprep.subr.mxu0 0.0
    %210 = vmatpush1.msra.mxu0 0.0
    %211 = vmatprep.subr.mxu0 0.0
    %212 = vmatpush1.msra.mxu0 0.0
    %213 = vmatprep.subr.mxu0 0.0
    %214 = vmatpush1.msra.mxu0 0.0
    %215 = vmatprep.subr.mxu0 0.0
    %216 = vmatpush1.msra.mxu0 0.0
    %217 = vmatprep.subr.mxu0 0.0
    %218 = vmatpush1.msra.mxu0 0.0
    %219 = vmatprep.subr.mxu0 0.0
    %220 = vmatpush1.msra.mxu0 0.0
    %221 = vmatprep.subr.mxu0 0.0
    %222 = vmatpush1.msra.mxu0 0.0
    %223 = vmatprep.subr.mxu0 0.0
    %224 = vmatpush1.msra.mxu0 0.0
    %225 = vmatprep.mubr.f32.mxu0 0.0
    %226 = vmatmul.mubr.f32.gmra.mrb[0].mxu0 %v160
    %v227 = vpop.f32.mrb[0].mxu0
    %v228 = vadd.f32 %v84, %v227
    %v229 = vpop.f32.mrb[0].mxu0
    %230 = vdwg.mxu0
    %231 = vset.pattern.permute.xlu0 2
    %232 = vperm.xlu0 %231, %v55
    %v233 = vpop.permute.xlu0 %232
    %vm234 = vcmp.eq.s32.totalorder %v233, %v57
    %v235 = vsel %vm234, 1, 0
    %v236 = vcvt.s32.f32 %v235
    %237 = vmatprep.subr.mxu0 0.0
    %238 = vmatpush1.msra.mxu0 %v58
    %239 = vmatprep.subr.mxu0 0.0
    %240 = vmatpush1.msra.mxu0 %v59
    %241 = vmatprep.subr.mxu0 0.0
    %242 = vmatpush1.msra.mxu0 %v60
    %243 = vmatprep.subr.mxu0 0.0
    %244 = vmatpush1.msra.mxu0 %v61
    %245 = vmatprep.subr.mxu0 0.0
    %246 = vmatpush1.msra.mxu0 %v62
    %247 = vmatprep.subr.mxu0 0.0
    %248 = vmatpush1.msra.mxu0 %v63
    %249 = vmatprep.subr.mxu0 0.0
    %250 = vmatpush1.msra.mxu0 %v64
    %251 = vmatprep.subr.mxu0 0.0
    %252 = vmatpush1.msra.mxu0 %v65
    %253 = vmatprep.subr.mxu0 0.0
    %254 = vmatpush1.msra.mxu0 %v66
    %255 = vmatprep.subr.mxu0 0.0
    %256 = vmatpush1.msra.mxu0 %v67
    %257 = vmatprep.subr.mxu0 0.0
    %258 = vmatpush1.msra.mxu0 %v68
    %259 = vmatprep.subr.mxu0 0.0
    %260 = vmatpush1.msra.mxu0 %v69
    %261 = vmatprep.subr.mxu0 0.0
    %262 = vmatpush1.msra.mxu0 %v70
    %263 = vmatprep.subr.mxu0 0.0
    %264 = vmatpush1.msra.mxu0 %v71
    %265 = vmatprep.subr.mxu0 0.0
    %266 = vmatpush1.msra.mxu0 %v72
    %267 = vmatprep.subr.mxu0 0.0
    %268 = vmatpush1.msra.mxu0 %v73
    %269 = vmatprep.subr.mxu0 0.0
    %270 = vmatpush1.msra.mxu0 0.0
    %271 = vmatprep.subr.mxu0 0.0
    %272 = vmatpush1.msra.mxu0 0.0
    %273 = vmatprep.subr.mxu0 0.0
    %274 = vmatpush1.msra.mxu0 0.0
    %275 = vmatprep.subr.mxu0 0.0
    %276 = vmatpush1.msra.mxu0 0.0
    %277 = vmatprep.subr.mxu0 0.0
    %278 = vmatpush1.msra.mxu0 0.0
    %279 = vmatprep.subr.mxu0 0.0
    %280 = vmatpush1.msra.mxu0 0.0
    %281 = vmatprep.subr.mxu0 0.0
    %282 = vmatpush1.msra.mxu0 0.0
    %283 = vmatprep.subr.mxu0 0.0
    %284 = vmatpush1.msra.mxu0 0.0
    %285 = vmatprep.subr.mxu0 0.0
    %286 = vmatpush1.msra.mxu0 0.0
    %287 = vmatprep.subr.mxu0 0.0
    %288 = vmatpush1.msra.mxu0 0.0
    %289 = vmatprep.subr.mxu0 0.0
    %290 = vmatpush1.msra.mxu0 0.0
    %291 = vmatprep.subr.mxu0 0.0
    %292 = vmatpush1.msra.mxu0 0.0
    %293 = vmatprep.subr.mxu0 0.0
    %294 = vmatpush1.msra.mxu0 0.0
    %295 = vmatprep.subr.mxu0 0.0
    %296 = vmatpush1.msra.mxu0 0.0
    %297 = vmatprep.subr.mxu0 0.0
    %298 = vmatpush1.msra.mxu0 0.0
    %299 = vmatprep.subr.mxu0 0.0
    %300 = vmatpush1.msra.mxu0 0.0
    %301 = vmatprep.mubr.f32.mxu0 0.0
    %302 = vmatmul.mubr.f32.gmra.mrb[0].mxu0 %v236
    %v303 = vpop.f32.mrb[0].mxu0
    %v304 = vadd.f32 %v84, %v303
    %v305 = vpop.f32.mrb[0].mxu0
    %306 = vdwg.mxu0
    %307 = vset.pattern.permute.xlu0 3
    %308 = vperm.xlu0 %307, %v55
    %v309 = vpop.permute.xlu0 %308
    %vm310 = vcmp.eq.s32.totalorder %v309, %v57
    %v311 = vsel %vm310, 1, 0
    %v312 = vcvt.s32.f32 %v311
    %313 = vmatprep.subr.mxu0 0.0
    %314 = vmatpush1.msra.mxu0 %v58
    %315 = vmatprep.subr.mxu0 0.0
    %316 = vmatpush1.msra.mxu0 %v59
    %317 = vmatprep.subr.mxu0 0.0
    %318 = vmatpush1.msra.mxu0 %v60
    %319 = vmatprep.subr.mxu0 0.0
    %320 = vmatpush1.msra.mxu0 %v61
    %321 = vmatprep.subr.mxu0 0.0
    %322 = vmatpush1.msra.mxu0 %v62
    %323 = vmatprep.subr.mxu0 0.0
    %324 = vmatpush1.msra.mxu0 %v63
    %325 = vmatprep.subr.mxu0 0.0
    %326 = vmatpush1.msra.mxu0 %v64
    %327 = vmatprep.subr.mxu0 0.0
    %328 = vmatpush1.msra.mxu0 %v65
    %329 = vmatprep.subr.mxu0 0.0
    %330 = vmatpush1.msra.mxu0 %v66
    %331 = vmatprep.subr.mxu0 0.0
    %332 = vmatpush1.msra.mxu0 %v67
    %333 = vmatprep.subr.mxu0 0.0
    %334 = vmatpush1.msra.mxu0 %v68
    %335 = vmatprep.subr.mxu0 0.0
    %336 = vmatpush1.msra.mxu0 %v69
    %337 = vmatprep.subr.mxu0 0.0
    %338 = vmatpush1.msra.mxu0 %v70
    %339 = vmatprep.subr.mxu0 0.0
    %340 = vmatpush1.msra.mxu0 %v71
    %341 = vmatprep.subr.mxu0 0.0
    %342 = vmatpush1.msra.mxu0 %v72
    %343 = vmatprep.subr.mxu0 0.0
    %344 = vmatpush1.msra.mxu0 %v73
    %345 = vmatprep.subr.mxu0 0.0
    %346 = vmatpush1.msra.mxu0 0.0
    %347 = vmatprep.subr.mxu0 0.0
    %348 = vmatpush1.msra.mxu0 0.0
    %349 = vmatprep.subr.mxu0 0.0
    %350 = vmatpush1.msra.mxu0 0.0
    %351 = vmatprep.subr.mxu0 0.0
    %352 = vmatpush1.msra.mxu0 0.0
    %353 = vmatprep.subr.mxu0 0.0
    %354 = vmatpush1.msra.mxu0 0.0
    %355 = vmatprep.subr.mxu0 0.0
    %356 = vmatpush1.msra.mxu0 0.0
    %357 = vmatprep.subr.mxu0 0.0
    %358 = vmatpush1.msra.mxu0 0.0
    %359 = vmatprep.subr.mxu0 0.0
    %360 = vmatpush1.msra.mxu0 0.0
    %361 = vmatprep.subr.mxu0 0.0
    %362 = vmatpush1.msra.mxu0 0.0
    %363 = vmatprep.subr.mxu0 0.0
    %364 = vmatpush1.msra.mxu0 0.0
    %365 = vmatprep.subr.mxu0 0.0
    %366 = vmatpush1.msra.mxu0 0.0
    %367 = vmatprep.subr.mxu0 0.0
    %368 = vmatpush1.msra.mxu0 0.0
    %369 = vmatprep.subr.mxu0 0.0
    %370 = vmatpush1.msra.mxu0 0.0
    %371 = vmatprep.subr.mxu0 0.0
    %372 = vmatpush1.msra.mxu0 0.0
    %373 = vmatprep.subr.mxu0 0.0
    %374 = vmatpush1.msra.mxu0 0.0
    %375 = vmatprep.subr.mxu0 0.0
    %376 = vmatpush1.msra.mxu0 0.0
    %377 = vmatprep.mubr.f32.mxu0 0.0
    %378 = vmatmul.mubr.f32.gmra.mrb[0].mxu0 %v312
    %v379 = vpop.f32.mrb[0].mxu0
    %v380 = vadd.f32 %v84, %v379
    %v381 = vpop.f32.mrb[0].mxu0
    %382 = vdwg.mxu0
    %383 = vset.pattern.permute.xlu0 4
    %384 = vperm.xlu0 %383, %v55
    %v385 = vpop.permute.xlu0 %384
    %vm386 = vcmp.eq.s32.totalorder %v385, %v57
    %v387 = vsel %vm386, 1, 0
    %v388 = vcvt.s32.f32 %v387
    %389 = vmatprep.subr.mxu0 0.0
    %390 = vmatpush1.msra.mxu0 %v58
    %391 = vmatprep.subr.mxu0 0.0
    %392 = vmatpush1.msra.mxu0 %v59
    %393 = vmatprep.subr.mxu0 0.0
    %394 = vmatpush1.msra.mxu0 %v60
    %395 = vmatprep.subr.mxu0 0.0
    %396 = vmatpush1.msra.mxu0 %v61
    %397 = vmatprep.subr.mxu0 0.0
    %398 = vmatpush1.msra.mxu0 %v62
    %399 = vmatprep.subr.mxu0 0.0
    %400 = vmatpush1.msra.mxu0 %v63
    %401 = vmatprep.subr.mxu0 0.0
    %402 = vmatpush1.msra.mxu0 %v64
    %403 = vmatprep.subr.mxu0 0.0
    %404 = vmatpush1.msra.mxu0 %v65
    %405 = vmatprep.subr.mxu0 0.0
    %406 = vmatpush1.msra.mxu0 %v66
    %407 = vmatprep.subr.mxu0 0.0
    %408 = vmatpush1.msra.mxu0 %v67
    %409 = vmatprep.subr.mxu0 0.0
    %410 = vmatpush1.msra.mxu0 %v68
    %411 = vmatprep.subr.mxu0 0.0
    %412 = vmatpush1.msra.mxu0 %v69
    %413 = vmatprep.subr.mxu0 0.0
    %414 = vmatpush1.msra.mxu0 %v70
    %415 = vmatprep.subr.mxu0 0.0
    %416 = vmatpush1.msra.mxu0 %v71
    %417 = vmatprep.subr.mxu0 0.0
    %418 = vmatpush1.msra.mxu0 %v72
    %419 = vmatprep.subr.mxu0 0.0
    %420 = vmatpush1.msra.mxu0 %v73
    %421 = vmatprep.subr.mxu0 0.0
    %422 = vmatpush1.msra.mxu0 0.0
    %423 = vmatprep.subr.mxu0 0.0
    %424 = vmatpush1.msra.mxu0 0.0
    %425 = vmatprep.subr.mxu0 0.0
    %426 = vmatpush1.msra.mxu0 0.0
    %427 = vmatprep.subr.mxu0 0.0
    %428 = vmatpush1.msra.mxu0 0.0
    %429 = vmatprep.subr.mxu0 0.0
    %430 = vmatpush1.msra.mxu0 0.0
    %431 = vmatprep.subr.mxu0 0.0
    %432 = vmatpush1.msra.mxu0 0.0
    %433 = vmatprep.subr.mxu0 0.0
    %434 = vmatpush1.msra.mxu0 0.0
    %435 = vmatprep.subr.mxu0 0.0
    %436 = vmatpush1.msra.mxu0 0.0
    %437 = vmatprep.subr.mxu0 0.0
    %438 = vmatpush1.msra.mxu0 0.0
    %439 = vmatprep.subr.mxu0 0.0
    %440 = vmatpush1.msra.mxu0 0.0
    %441 = vmatprep.subr.mxu0 0.0
    %442 = vmatpush1.msra.mxu0 0.0
    %443 = vmatprep.subr.mxu0 0.0
    %444 = vmatpush1.msra.mxu0 0.0
    %445 = vmatprep.subr.mxu0 0.0
    %446 = vmatpush1.msra.mxu0 0.0
    %447 = vmatprep.subr.mxu0 0.0
    %448 = vmatpush1.msra.mxu0 0.0
    %449 = vmatprep.subr.mxu0 0.0
    %450 = vmatpush1.msra.mxu0 0.0
    %451 = vmatprep.subr.mxu0 0.0
    %452 = vmatpush1.msra.mxu0 0.0
    %453 = vmatprep.mubr.f32.mxu0 0.0
    %454 = vmatmul.mubr.f32.gmra.mrb[0].mxu0 %v388
    %v455 = vpop.f32.mrb[0].mxu0
    %v456 = vadd.f32 %v84, %v455
    %v457 = vpop.f32.mrb[0].mxu0
    %458 = vdwg.mxu0
    %459 = vset.pattern.permute.xlu0 5
    %460 = vperm.xlu0 %459, %v55
    %v461 = vpop.permute.xlu0 %460
    %vm462 = vcmp.eq.s32.totalorder %v461, %v57
    %v463 = vsel %vm462, 1, 0
    %v464 = vcvt.s32.f32 %v463
    %465 = vmatprep.subr.mxu0 0.0
    %466 = vmatpush1.msra.mxu0 %v58
    %467 = vmatprep.subr.mxu0 0.0
    %468 = vmatpush1.msra.mxu0 %v59
    %469 = vmatprep.subr.mxu0 0.0
    %470 = vmatpush1.msra.mxu0 %v60
    %471 = vmatprep.subr.mxu0 0.0
    %472 = vmatpush1.msra.mxu0 %v61
    %473 = vmatprep.subr.mxu0 0.0
    %474 = vmatpush1.msra.mxu0 %v62
    %475 = vmatprep.subr.mxu0 0.0
    %476 = vmatpush1.msra.mxu0 %v63
    %477 = vmatprep.subr.mxu0 0.0
    %478 = vmatpush1.msra.mxu0 %v64
    %479 = vmatprep.subr.mxu0 0.0
    %480 = vmatpush1.msra.mxu0 %v65
    %481 = vmatprep.subr.mxu0 0.0
    %482 = vmatpush1.msra.mxu0 %v66
    %483 = vmatprep.subr.mxu0 0.0
    %484 = vmatpush1.msra.mxu0 %v67
    %485 = vmatprep.subr.mxu0 0.0
    %486 = vmatpush1.msra.mxu0 %v68
    %487 = vmatprep.subr.mxu0 0.0
    %488 = vmatpush1.msra.mxu0 %v69
    %489 = vmatprep.subr.mxu0 0.0
    %490 = vmatpush1.msra.mxu0 %v70
    %491 = vmatprep.subr.mxu0 0.0
    %492 = vmatpush1.msra.mxu0 %v71
    %493 = vmatprep.subr.mxu0 0.0
    %494 = vmatpush1.msra.mxu0 %v72
    %495 = vmatprep.subr.mxu0 0.0
    %496 = vmatpush1.msra.mxu0 %v73
    %497 = vmatprep.subr.mxu0 0.0
    %498 = vmatpush1.msra.mxu0 0.0
    %499 = vmatprep.subr.mxu0 0.0
    %500 = vmatpush1.msra.mxu0 0.0
    %501 = vmatprep.subr.mxu0 0.0
    %502 = vmatpush1.msra.mxu0 0.0
    %503 = vmatprep.subr.mxu0 0.0
    %504 = vmatpush1.msra.mxu0 0.0
    %505 = vmatprep.subr.mxu0 0.0
    %506 = vmatpush1.msra.mxu0 0.0
    %507 = vmatprep.subr.mxu0 0.0
    %508 = vmatpush1.msra.mxu0 0.0
    %509 = vmatprep.subr.mxu0 0.0
    %510 = vmatpush1.msra.mxu0 0.0
    %511 = vmatprep.subr.mxu0 0.0
    %512 = vmatpush1.msra.mxu0 0.0
    %513 = vmatprep.subr.mxu0 0.0
    %514 = vmatpush1.msra.mxu0 0.0
    %515 = vmatprep.subr.mxu0 0.0
    %516 = vmatpush1.msra.mxu0 0.0
    %517 = vmatprep.subr.mxu0 0.0
    %518 = vmatpush1.msra.mxu0 0.0
    %519 = vmatprep.subr.mxu0 0.0
    %520 = vmatpush1.msra.mxu0 0.0
    %521 = vmatprep.subr.mxu0 0.0
    %522 = vmatpush1.msra.mxu0 0.0
    %523 = vmatprep.subr.mxu0 0.0
    %524 = vmatpush1.msra.mxu0 0.0
    %525 = vmatprep.subr.mxu0 0.0
    %526 = vmatpush1.msra.mxu0 0.0
    %527 = vmatprep.subr.mxu0 0.0
    %528 = vmatpush1.msra.mxu0 0.0
    %529 = vmatprep.mubr.f32.mxu0 0.0
    %530 = vmatmul.mubr.f32.gmra.mrb[0].mxu0 %v464
    %v531 = vpop.f32.mrb[0].mxu0
    %v532 = vadd.f32 %v84, %v531
    %v533 = vpop.f32.mrb[0].mxu0
    %534 = vdwg.mxu0
    %535 = vset.pattern.permute.xlu0 6
    %536 = vperm.xlu0 %535, %v55
    %v537 = vpop.permute.xlu0 %536
    %vm538 = vcmp.eq.s32.totalorder %v537, %v57
    %v539 = vsel %vm538, 1, 0
    %v540 = vcvt.s32.f32 %v539
    %541 = vmatprep.subr.mxu0 0.0
    %542 = vmatpush1.msra.mxu0 %v58
    %543 = vmatprep.subr.mxu0 0.0
    %544 = vmatpush1.msra.mxu0 %v59
    %545 = vmatprep.subr.mxu0 0.0
    %546 = vmatpush1.msra.mxu0 %v60
    %547 = vmatprep.subr.mxu0 0.0
    %548 = vmatpush1.msra.mxu0 %v61
    %549 = vmatprep.subr.mxu0 0.0
    %550 = vmatpush1.msra.mxu0 %v62
    %551 = vmatprep.subr.mxu0 0.0
    %552 = vmatpush1.msra.mxu0 %v63
    %553 = vmatprep.subr.mxu0 0.0
    %554 = vmatpush1.msra.mxu0 %v64
    %555 = vmatprep.subr.mxu0 0.0
    %556 = vmatpush1.msra.mxu0 %v65
    %557 = vmatprep.subr.mxu0 0.0
    %558 = vmatpush1.msra.mxu0 %v66
    %559 = vmatprep.subr.mxu0 0.0
    %560 = vmatpush1.msra.mxu0 %v67
    %561 = vmatprep.subr.mxu0 0.0
    %562 = vmatpush1.msra.mxu0 %v68
    %563 = vmatprep.subr.mxu0 0.0
    %564 = vmatpush1.msra.mxu0 %v69
    %565 = vmatprep.subr.mxu0 0.0
    %566 = vmatpush1.msra.mxu0 %v70
    %567 = vmatprep.subr.mxu0 0.0
    %568 = vmatpush1.msra.mxu0 %v71
    %569 = vmatprep.subr.mxu0 0.0
    %570 = vmatpush1.msra.mxu0 %v72
    %571 = vmatprep.subr.mxu0 0.0
    %572 = vmatpush1.msra.mxu0 %v73
    %573 = vmatprep.subr.mxu0 0.0
    %574 = vmatpush1.msra.mxu0 0.0
    %575 = vmatprep.subr.mxu0 0.0
    %576 = vmatpush1.msra.mxu0 0.0
    %577 = vmatprep.subr.mxu0 0.0
    %578 = vmatpush1.msra.mxu0 0.0
    %579 = vmatprep.subr.mxu0 0.0
    %580 = vmatpush1.msra.mxu0 0.0
    %581 = vmatprep.subr.mxu0 0.0
    %582 = vmatpush1.msra.mxu0 0.0
    %583 = vmatprep.subr.mxu0 0.0
    %584 = vmatpush1.msra.mxu0 0.0
    %585 = vmatprep.subr.mxu0 0.0
    %586 = vmatpush1.msra.mxu0 0.0
    %587 = vmatprep.subr.mxu0 0.0
    %588 = vmatpush1.msra.mxu0 0.0
    %589 = vmatprep.subr.mxu0 0.0
    %590 = vmatpush1.msra.mxu0 0.0
    %591 = vmatprep.subr.mxu0 0.0
    %592 = vmatpush1.msra.mxu0 0.0
    %593 = vmatprep.subr.mxu0 0.0
    %594 = vmatpush1.msra.mxu0 0.0
    %595 = vmatprep.subr.mxu0 0.0
    %596 = vmatpush1.msra.mxu0 0.0
    %597 = vmatprep.subr.mxu0 0.0
    %598 = vmatpush1.msra.mxu0 0.0
    %599 = vmatprep.subr.mxu0 0.0
    %600 = vmatpush1.msra.mxu0 0.0
    %601 = vmatprep.subr.mxu0 0.0
    %602 = vmatpush1.msra.mxu0 0.0
    %603 = vmatprep.subr.mxu0 0.0
    %604 = vmatpush1.msra.mxu0 0.0
    %605 = vmatprep.mubr.f32.mxu0 0.0
    %606 = vmatmul.mubr.f32.gmra.mrb[0].mxu0 %v540
    %v607 = vpop.f32.mrb[0].mxu0
    %v608 = vadd.f32 %v84, %v607
    %v609 = vpop.f32.mrb[0].mxu0
    %610 = vdwg.mxu0
    %611 = vset.pattern.permute.xlu0 7
    %612 = vperm.xlu0 %611, %v55
    %v613 = vpop.permute.xlu0 %612
    %vm614 = vcmp.eq.s32.totalorder %v613, %v57
    %v615 = vsel %vm614, 1, 0
    %v616 = vcvt.s32.f32 %v615
    %617 = vmatprep.subr.mxu0 0.0
    %618 = vmatpush1.msra.mxu0 %v58
    %619 = vmatprep.subr.mxu0 0.0
    %620 = vmatpush1.msra.mxu0 %v59
    %621 = vmatprep.subr.mxu0 0.0
    %622 = vmatpush1.msra.mxu0 %v60
    %623 = vmatprep.subr.mxu0 0.0
    %624 = vmatpush1.msra.mxu0 %v61
    %625 = vmatprep.subr.mxu0 0.0
    %626 = vmatpush1.msra.mxu0 %v62
    %627 = vmatprep.subr.mxu0 0.0
    %628 = vmatpush1.msra.mxu0 %v63
    %629 = vmatprep.subr.mxu0 0.0
    %630 = vmatpush1.msra.mxu0 %v64
    %631 = vmatprep.subr.mxu0 0.0
    %632 = vmatpush1.msra.mxu0 %v65
    %633 = vmatprep.subr.mxu0 0.0
    %634 = vmatpush1.msra.mxu0 %v66
    %635 = vmatprep.subr.mxu0 0.0
    %636 = vmatpush1.msra.mxu0 %v67
    %637 = vmatprep.subr.mxu0 0.0
    %638 = vmatpush1.msra.mxu0 %v68
    %639 = vmatprep.subr.mxu0 0.0
    %640 = vmatpush1.msra.mxu0 %v69
    %641 = vmatprep.subr.mxu0 0.0
    %642 = vmatpush1.msra.mxu0 %v70
    %643 = vmatprep.subr.mxu0 0.0
    %644 = vmatpush1.msra.mxu0 %v71
    %645 = vmatprep.subr.mxu0 0.0
    %646 = vmatpush1.msra.mxu0 %v72
    %647 = vmatprep.subr.mxu0 0.0
    %648 = vmatpush1.msra.mxu0 %v73
    %649 = vmatprep.subr.mxu0 0.0
    %650 = vmatpush1.msra.mxu0 0.0
    %651 = vmatprep.subr.mxu0 0.0
    %652 = vmatpush1.msra.mxu0 0.0
    %653 = vmatprep.subr.mxu0 0.0
    %654 = vmatpush1.msra.mxu0 0.0
    %655 = vmatprep.subr.mxu0 0.0
    %656 = vmatpush1.msra.mxu0 0.0
    %657 = vmatprep.subr.mxu0 0.0
    %658 = vmatpush1.msra.mxu0 0.0
    %659 = vmatprep.subr.mxu0 0.0
    %660 = vmatpush1.msra.mxu0 0.0
    %661 = vmatprep.subr.mxu0 0.0
    %662 = vmatpush1.msra.mxu0 0.0
    %663 = vmatprep.subr.mxu0 0.0
    %664 = vmatpush1.msra.mxu0 0.0
    %665 = vmatprep.subr.mxu0 0.0
    %666 = vmatpush1.msra.mxu0 0.0
    %667 = vmatprep.subr.mxu0 0.0
    %668 = vmatpush1.msra.mxu0 0.0
    %669 = vmatprep.subr.mxu0 0.0
    %670 = vmatpush1.msra.mxu0 0.0
    %671 = vmatprep.subr.mxu0 0.0
    %672 = vmatpush1.msra.mxu0 0.0
    %673 = vmatprep.subr.mxu0 0.0
    %674 = vmatpush1.msra.mxu0 0.0
    %675 = vmatprep.subr.mxu0 0.0
    %676 = vmatpush1.msra.mxu0 0.0
    %677 = vmatprep.subr.mxu0 0.0
    %678 = vmatpush1.msra.mxu0 0.0
    %679 = vmatprep.subr.mxu0 0.0
    %680 = vmatpush1.msra.mxu0 0.0
    %681 = vmatprep.mubr.f32.mxu0 0.0
    %682 = vmatmul.mubr.f32.gmra.mrb[0].mxu0 %v616
    %v683 = vpop.f32.mrb[0].mxu0
    %v684 = vadd.f32 %v84, %v683
    %v685 = vpop.f32.mrb[0].mxu0
    %686 = vdwg.mxu0
    %s687 = scalar_lea.vmem [#allocation5], 64
    %v688 = vld [vmem:[%s687] sm:$0xf]
    %v689 = vld [vmem:[%s687 + $0x4] sm:$0xf]
    %v690 = vld [vmem:[%s687 + $0x8] sm:$0xf]
    %v691 = vld [vmem:[%s687 + $0xc] sm:$0xf]
    %v692 = vld [vmem:[%s687 + $0x10] sm:$0xf]
    %v693 = vld [vmem:[%s687 + $0x14] sm:$0xf]
    %v694 = vld [vmem:[%s687 + $0x18] sm:$0xf]
    %v695 = vld [vmem:[%s687 + $0x1c] sm:$0xf]
    %v696 = vld [vmem:[%s687 + $0x20] sm:$0xf]
    %v697 = vld [vmem:[%s687 + $0x24] sm:$0xf]
    %v698 = vld [vmem:[%s687 + $0x28] sm:$0xf]
    %v699 = vld [vmem:[%s687 + $0x2c] sm:$0xf]
    %v700 = vld [vmem:[%s687 + $0x30] sm:$0xf]
    %v701 = vld [vmem:[%s687 + $0x34] sm:$0xf]
    %v702 = vld [vmem:[%s687 + $0x38] sm:$0xf]
    %v703 = vld [vmem:[%s687 + $0x3c] sm:$0xf]
    %v720 = vunpack.c.l.b16 %v688
    %v721 = vunpack.c.l.b16 %v689
    %v722 = vunpack.c.l.b16 %v690
    %v723 = vunpack.c.l.b16 %v691
    %v724 = vunpack.c.l.b16 %v692
    %v725 = vunpack.c.l.b16 %v693
    %v726 = vunpack.c.l.b16 %v694
    %v727 = vunpack.c.l.b16 %v695
    %v728 = vunpack.c.l.b16 %v696
    %v729 = vunpack.c.l.b16 %v697
    %v730 = vunpack.c.l.b16 %v698
    %v731 = vunpack.c.l.b16 %v699
    %v732 = vunpack.c.l.b16 %v700
    %v733 = vunpack.c.l.b16 %v701
    %v734 = vunpack.c.l.b16 %v702
    %v735 = vunpack.c.l.b16 %v703
    %v736 = vpack.c.b16 %v721, %v720
    %v737 = vpack.c.b16 %v723, %v722
    %v738 = vpack.c.b16 %v725, %v724
    %v739 = vpack.c.b16 %v727, %v726
    %v740 = vpack.c.b16 %v729, %v728
    %v741 = vpack.c.b16 %v731, %v730
    %v742 = vpack.c.b16 %v733, %v732
    %v743 = vpack.c.b16 %v735, %v734
    %752 = vmatprep.subr.bf16.mxu0 0
    %753 = vmatpush1.bf16.msra.mxu0 %v736
    %754 = vmatprep.subr.bf16.mxu0 0
    %755 = vmatpush1.bf16.msra.mxu0 %v737
    %756 = vmatprep.subr.bf16.mxu0 0
    %757 = vmatpush1.bf16.msra.mxu0 %v738
    %758 = vmatprep.subr.bf16.mxu0 0
    %759 = vmatpush1.bf16.msra.mxu0 %v739
    %760 = vmatprep.subr.bf16.mxu0 0
    %761 = vmatpush1.bf16.msra.mxu0 %v740
    %762 = vmatprep.subr.bf16.mxu0 0
    %763 = vmatpush1.bf16.msra.mxu0 %v741
    %764 = vmatprep.subr.bf16.mxu0 0
    %765 = vmatpush1.bf16.msra.mxu0 %v742
    %766 = vmatprep.subr.bf16.mxu0 0
    %767 = vmatpush1.bf16.msra.mxu0 %v743
    %768 = vmatprep.subr.bf16.mxu0 0
    %769 = vmatpush1.bf16.msra.mxu0 0
    %770 = vmatprep.subr.bf16.mxu0 0
    %771 = vmatpush1.bf16.msra.mxu0 0
    %772 = vmatprep.subr.bf16.mxu0 0
    %773 = vmatpush1.bf16.msra.mxu0 0
    %774 = vmatprep.subr.bf16.mxu0 0
    %775 = vmatpush1.bf16.msra.mxu0 0
    %776 = vmatprep.subr.bf16.mxu0 0
    %777 = vmatpush1.bf16.msra.mxu0 0
    %778 = vmatprep.subr.bf16.mxu0 0
    %779 = vmatpush1.bf16.msra.mxu0 0
    %780 = vmatprep.subr.bf16.mxu0 0
    %781 = vmatpush1.bf16.msra.mxu0 0
    %782 = vmatprep.subr.bf16.mxu0 0
    %783 = vmatpush1.bf16.msra.mxu0 0
    %784 = vmatprep.mubr.bf16.mxu0 0
    %785 = vmatmul.mubr.bf16.gmra.mrb[0].mxu0 0
    %v786 = vpop.f32.mrb[0].mxu0
    %v787 = vadd.f32 0.0, %v786
    %v788 = vpop.f32.mrb[0].mxu0
    %v789 = vpop.f32.mrb[0].mxu0
    %v790 = vpop.f32.mrb[0].mxu0
    %791 = vdwg.mxu0
    %v792 = vadd.f32 %v152, %v787
    %v793 = vtanh.pop %v792
    %vm794 = vcmp.eq.s32.totalorder %v54, 0
    %v795 = vsel %vm794, 1, 0
    %796 = vset.pattern.permute.xlu0 0
    %797 = vperm.xlu0 %796, %v795
    %v798 = vpop.permute.xlu0 %797
    %vm799 = vcmp.eq.s32.totalorder %v798, 1
    %v800 = vsel %vm799, %v793, 0.0
    %v801 = vpack.c.bf16 %v793, %v793
    %802 = vmatprep.subr.bf16.mxu0 0
    %803 = vmatpush1.bf16.msra.mxu0 %v736
    %804 = vmatprep.subr.bf16.mxu0 0
    %805 = vmatpush1.bf16.msra.mxu0 %v737
    %806 = vmatprep.subr.bf16.mxu0 0
    %807 = vmatpush1.bf16.msra.mxu0 %v738
    %808 = vmatprep.subr.bf16.mxu0 0
    %809 = vmatpush1.bf16.msra.mxu0 %v739
    %810 = vmatprep.subr.bf16.mxu0 0
    %811 = vmatpush1.bf16.msra.mxu0 %v740
    %812 = vmatprep.subr.bf16.mxu0 0
    %813 = vmatpush1.bf16.msra.mxu0 %v741
    %814 = vmatprep.subr.bf16.mxu0 0
    %815 = vmatpush1.bf16.msra.mxu0 %v742
    %816 = vmatprep.subr.bf16.mxu0 0
    %817 = vmatpush1.bf16.msra.mxu0 %v743
    %818 = vmatprep.subr.bf16.mxu0 0
    %819 = vmatpush1.bf16.msra.mxu0 0
    %820 = vmatprep.subr.bf16.mxu0 0
    %821 = vmatpush1.bf16.msra.mxu0 0
    %822 = vmatprep.subr.bf16.mxu0 0
    %823 = vmatpush1.bf16.msra.mxu0 0
    %824 = vmatprep.subr.bf16.mxu0 0
    %825 = vmatpush1.bf16.msra.mxu0 0
    %826 = vmatprep.subr.bf16.mxu0 0
    %827 = vmatpush1.bf16.msra.mxu0 0
    %828 = vmatprep.subr.bf16.mxu0 0
    %829 = vmatpush1.bf16.msra.mxu0 0
    %830 = vmatprep.subr.bf16.mxu0 0
    %831 = vmatpush1.bf16.msra.mxu0 0
    %832 = vmatprep.subr.bf16.mxu0 0
    %833 = vmatpush1.bf16.msra.mxu0 0
    %834 = vmatprep.mubr.bf16.mxu0 0
    %835 = vmatmul.mubr.bf16.gmra.mrb[0].mxu0 %v801
    %v836 = vpop.f32.mrb[0].mxu0
    %v837 = vadd.f32 0.0, %v836
    %v838 = vpop.f32.mrb[0].mxu0
    %v839 = vpop.f32.mrb[0].mxu0
    %v840 = vpop.f32.mrb[0].mxu0
    %841 = vdwg.mxu0
    %v842 = vadd.f32 %v228, %v837
    %v843 = vtanh.pop %v842
    %vm844 = vcmp.eq.s32.totalorder %v54, 1
    %v845 = vsel %vm844, 1, 0
    %846 = vset.pattern.permute.xlu0 0
    %847 = vperm.xlu0 %846, %v845
    %v848 = vpop.permute.xlu0 %847
    %vm849 = vcmp.eq.s32.totalorder %v848, 1
    %v850 = vsel %vm849, %v843, %v800
    %v851 = vpack.c.bf16 %v843, %v843
    %852 = vmatprep.subr.bf16.mxu0 0
    %853 = vmatpush1.bf16.msra.mxu0 %v736
    %854 = vmatprep.subr.bf16.mxu0 0
    %855 = vmatpush1.bf16.msra.mxu0 %v737
    %856 = vmatprep.subr.bf16.mxu0 0
    %857 = vmatpush1.bf16.msra.mxu0 %v738
    %858 = vmatprep.subr.bf16.mxu0 0
    %859 = vmatpush1.bf16.msra.mxu0 %v739
    %860 = vmatprep.subr.bf16.mxu0 0
    %861 = vmatpush1.bf16.msra.mxu0 %v740
    %862 = vmatprep.subr.bf16.mxu0 0
    %863 = vmatpush1.bf16.msra.mxu0 %v741
    %864 = vmatprep.subr.bf16.mxu0 0
    %865 = vmatpush1.bf16.msra.mxu0 %v742
    %866 = vmatprep.subr.bf16.mxu0 0
    %867 = vmatpush1.bf16.msra.mxu0 %v743
    %868 = vmatprep.subr.bf16.mxu0 0
    %869 = vmatpush1.bf16.msra.mxu0 0
    %870 = vmatprep.subr.bf16.mxu0 0
    %871 = vmatpush1.bf16.msra.mxu0 0
    %872 = vmatprep.subr.bf16.mxu0 0
    %873 = vmatpush1.bf16.msra.mxu0 0
    %874 = vmatprep.subr.bf16.mxu0 0
    %875 = vmatpush1.bf16.msra.mxu0 0
    %876 = vmatprep.subr.bf16.mxu0 0
    %877 = vmatpush1.bf16.msra.mxu0 0
    %878 = vmatprep.subr.bf16.mxu0 0
    %879 = vmatpush1.bf16.msra.mxu0 0
    %880 = vmatprep.subr.bf16.mxu0 0
    %881 = vmatpush1.bf16.msra.mxu0 0
    %882 = vmatprep.subr.bf16.mxu0 0
    %883 = vmatpush1.bf16.msra.mxu0 0
    %884 = vmatprep.mubr.bf16.mxu0 0
    %885 = vmatmul.mubr.bf16.gmra.mrb[0].mxu0 %v851
    %v886 = vpop.f32.mrb[0].mxu0
    %v887 = vadd.f32 0.0, %v886
    %v888 = vpop.f32.mrb[0].mxu0
    %v889 = vpop.f32.mrb[0].mxu0
    %v890 = vpop.f32.mrb[0].mxu0
    %891 = vdwg.mxu0
    %v892 = vadd.f32 %v304, %v887
    %v893 = vtanh.pop %v892
    %vm894 = vcmp.eq.s32.totalorder %v54, 2
    %v895 = vsel %vm894, 1, 0
    %896 = vset.pattern.permute.xlu0 0
    %897 = vperm.xlu0 %896, %v895
    %v898 = vpop.permute.xlu0 %897
    %vm899 = vcmp.eq.s32.totalorder %v898, 1
    %v900 = vsel %vm899, %v893, %v850
    %v901 = vpack.c.bf16 %v893, %v893
    %902 = vmatprep.subr.bf16.mxu0 0
    %903 = vmatpush1.bf16.msra.mxu0 %v736
    %904 = vmatprep.subr.bf16.mxu0 0
    %905 = vmatpush1.bf16.msra.mxu0 %v737
    %906 = vmatprep.subr.bf16.mxu0 0
    %907 = vmatpush1.bf16.msra.mxu0 %v738
    %908 = vmatprep.subr.bf16.mxu0 0
    %909 = vmatpush1.bf16.msra.mxu0 %v739
    %910 = vmatprep.subr.bf16.mxu0 0
    %911 = vmatpush1.bf16.msra.mxu0 %v740
    %912 = vmatprep.subr.bf16.mxu0 0
    %913 = vmatpush1.bf16.msra.mxu0 %v741
    %914 = vmatprep.subr.bf16.mxu0 0
    %915 = vmatpush1.bf16.msra.mxu0 %v742
    %916 = vmatprep.subr.bf16.mxu0 0
    %917 = vmatpush1.bf16.msra.mxu0 %v743
    %918 = vmatprep.subr.bf16.mxu0 0
    %919 = vmatpush1.bf16.msra.mxu0 0
    %920 = vmatprep.subr.bf16.mxu0 0
    %921 = vmatpush1.bf16.msra.mxu0 0
    %922 = vmatprep.subr.bf16.mxu0 0
    %923 = vmatpush1.bf16.msra.mxu0 0
    %924 = vmatprep.subr.bf16.mxu0 0
    %925 = vmatpush1.bf16.msra.mxu0 0
    %926 = vmatprep.subr.bf16.mxu0 0
    %927 = vmatpush1.bf16.msra.mxu0 0
    %928 = vmatprep.subr.bf16.mxu0 0
    %929 = vmatpush1.bf16.msra.mxu0 0
    %930 = vmatprep.subr.bf16.mxu0 0
    %931 = vmatpush1.bf16.msra.mxu0 0
    %932 = vmatprep.subr.bf16.mxu0 0
    %933 = vmatpush1.bf16.msra.mxu0 0
    %934 = vmatprep.mubr.bf16.mxu0 0
    %935 = vmatmul.mubr.bf16.gmra.mrb[0].mxu0 %v901
    %v936 = vpop.f32.mrb[0].mxu0
    %v937 = vadd.f32 0.0, %v936
    %v938 = vpop.f32.mrb[0].mxu0
    %v939 = vpop.f32.mrb[0].mxu0
    %v940 = vpop.f32.mrb[0].mxu0
    %941 = vdwg.mxu0
    %v942 = vadd.f32 %v380, %v937
    %v943 = vtanh.pop %v942
    %vm944 = vcmp.eq.s32.totalorder %v54, 3
    %v945 = vsel %vm944, 1, 0
    %946 = vset.pattern.permute.xlu0 0
    %947 = vperm.xlu0 %946, %v945
    %v948 = vpop.permute.xlu0 %947
    %vm949 = vcmp.eq.s32.totalorder %v948, 1
    %v950 = vsel %vm949, %v943, %v900
    %v951 = vpack.c.bf16 %v943, %v943
    %952 = vmatprep.subr.bf16.mxu0 0
    %953 = vmatpush1.bf16.msra.mxu0 %v736
    %954 = vmatprep.subr.bf16.mxu0 0
    %955 = vmatpush1.bf16.msra.mxu0 %v737
    %956 = vmatprep.subr.bf16.mxu0 0
    %957 = vmatpush1.bf16.msra.mxu0 %v738
    %958 = vmatprep.subr.bf16.mxu0 0
    %959 = vmatpush1.bf16.msra.mxu0 %v739
    %960 = vmatprep.subr.bf16.mxu0 0
    %961 = vmatpush1.bf16.msra.mxu0 %v740
    %962 = vmatprep.subr.bf16.mxu0 0
    %963 = vmatpush1.bf16.msra.mxu0 %v741
    %964 = vmatprep.subr.bf16.mxu0 0
    %965 = vmatpush1.bf16.msra.mxu0 %v742
    %966 = vmatprep.subr.bf16.mxu0 0
    %967 = vmatpush1.bf16.msra.mxu0 %v743
    %968 = vmatprep.subr.bf16.mxu0 0
    %969 = vmatpush1.bf16.msra.mxu0 0
    %970 = vmatprep.subr.bf16.mxu0 0
    %971 = vmatpush1.bf16.msra.mxu0 0
    %972 = vmatprep.subr.bf16.mxu0 0
    %973 = vmatpush1.bf16.msra.mxu0 0
    %974 = vmatprep.subr.bf16.mxu0 0
    %975 = vmatpush1.bf16.msra.mxu0 0
    %976 = vmatprep.subr.bf16.mxu0 0
    %977 = vmatpush1.bf16.msra.mxu0 0
    %978 = vmatprep.subr.bf16.mxu0 0
    %979 = vmatpush1.bf16.msra.mxu0 0
    %980 = vmatprep.subr.bf16.mxu0 0
    %981 = vmatpush1.bf16.msra.mxu0 0
    %982 = vmatprep.subr.bf16.mxu0 0
    %983 = vmatpush1.bf16.msra.mxu0 0
    %984 = vmatprep.mubr.bf16.mxu0 0
    %985 = vmatmul.mubr.bf16.gmra.mrb[0].mxu0 %v951
    %v986 = vpop.f32.mrb[0].mxu0
    %v987 = vadd.f32 0.0, %v986
    %v988 = vpop.f32.mrb[0].mxu0
    %v989 = vpop.f32.mrb[0].mxu0
    %v990 = vpop.f32.mrb[0].mxu0
    %991 = vdwg.mxu0
    %v992 = vadd.f32 %v456, %v987
    %v993 = vtanh.pop %v992
    %vm994 = vcmp.eq.s32.totalorder %v54, 4
    %v995 = vsel %vm994, 1, 0
    %996 = vset.pattern.permute.xlu0 0
    %997 = vperm.xlu0 %996, %v995
    %v998 = vpop.permute.xlu0 %997
    %vm999 = vcmp.eq.s32.totalorder %v998, 1
    %v1000 = vsel %vm999, %v993, %v950
    %v1001 = vpack.c.bf16 %v993, %v993
    %1002 = vmatprep.subr.bf16.mxu0 0
    %1003 = vmatpush1.bf16.msra.mxu0 %v736
    %1004 = vmatprep.subr.bf16.mxu0 0
    %1005 = vmatpush1.bf16.msra.mxu0 %v737
    %1006 = vmatprep.subr.bf16.mxu0 0
    %1007 = vmatpush1.bf16.msra.mxu0 %v738
    %1008 = vmatprep.subr.bf16.mxu0 0
    %1009 = vmatpush1.bf16.msra.mxu0 %v739
    %1010 = vmatprep.subr.bf16.mxu0 0
    %1011 = vmatpush1.bf16.msra.mxu0 %v740
    %1012 = vmatprep.subr.bf16.mxu0 0
    %1013 = vmatpush1.bf16.msra.mxu0 %v741
    %1014 = vmatprep.subr.bf16.mxu0 0
    %1015 = vmatpush1.bf16.msra.mxu0 %v742
    %1016 = vmatprep.subr.bf16.mxu0 0
    %1017 = vmatpush1.bf16.msra.mxu0 %v743
    %1018 = vmatprep.subr.bf16.mxu0 0
    %1019 = vmatpush1.bf16.msra.mxu0 0
    %1020 = vmatprep.subr.bf16.mxu0 0
    %1021 = vmatpush1.bf16.msra.mxu0 0
    %1022 = vmatprep.subr.bf16.mxu0 0
    %1023 = vmatpush1.bf16.msra.mxu0 0
    %1024 = vmatprep.subr.bf16.mxu0 0
    %1025 = vmatpush1.bf16.msra.mxu0 0
    %1026 = vmatprep.subr.bf16.mxu0 0
    %1027 = vmatpush1.bf16.msra.mxu0 0
    %1028 = vmatprep.subr.bf16.mxu0 0
    %1029 = vmatpush1.bf16.msra.mxu0 0
    %1030 = vmatprep.subr.bf16.mxu0 0
    %1031 = vmatpush1.bf16.msra.mxu0 0
    %1032 = vmatprep.subr.bf16.mxu0 0
    %1033 = vmatpush1.bf16.msra.mxu0 0
    %1034 = vmatprep.mubr.bf16.mxu0 0
    %1035 = vmatmul.mubr.bf16.gmra.mrb[0].mxu0 %v1001
    %v1036 = vpop.f32.mrb[0].mxu0
    %v1037 = vadd.f32 0.0, %v1036
    %v1038 = vpop.f32.mrb[0].mxu0
    %v1039 = vpop.f32.mrb[0].mxu0
    %v1040 = vpop.f32.mrb[0].mxu0
    %1041 = vdwg.mxu0
    %v1042 = vadd.f32 %v532, %v1037
    %v1043 = vtanh.pop %v1042
    %vm1044 = vcmp.eq.s32.totalorder %v54, 5
    %v1045 = vsel %vm1044, 1, 0
    %1046 = vset.pattern.permute.xlu0 0
    %1047 = vperm.xlu0 %1046, %v1045
    %v1048 = vpop.permute.xlu0 %1047
    %vm1049 = vcmp.eq.s32.totalorder %v1048, 1
    %v1050 = vsel %vm1049, %v1043, %v1000
    %v1051 = vpack.c.bf16 %v1043, %v1043
    %1052 = vmatprep.subr.bf16.mxu0 0
    %1053 = vmatpush1.bf16.msra.mxu0 %v736
    %1054 = vmatprep.subr.bf16.mxu0 0
    %1055 = vmatpush1.bf16.msra.mxu0 %v737
    %1056 = vmatprep.subr.bf16.mxu0 0
    %1057 = vmatpush1.bf16.msra.mxu0 %v738
    %1058 = vmatprep.subr.bf16.mxu0 0
    %1059 = vmatpush1.bf16.msra.mxu0 %v739
    %1060 = vmatprep.subr.bf16.mxu0 0
    %1061 = vmatpush1.bf16.msra.mxu0 %v740
    %1062 = vmatprep.subr.bf16.mxu0 0
    %1063 = vmatpush1.bf16.msra.mxu0 %v741
    %1064 = vmatprep.subr.bf16.mxu0 0
    %1065 = vmatpush1.bf16.msra.mxu0 %v742
    %1066 = vmatprep.subr.bf16.mxu0 0
    %1067 = vmatpush1.bf16.msra.mxu0 %v743
    %1068 = vmatprep.subr.bf16.mxu0 0
    %1069 = vmatpush1.bf16.msra.mxu0 0
    %1070 = vmatprep.subr.bf16.mxu0 0
    %1071 = vmatpush1.bf16.msra.mxu0 0
    %1072 = vmatprep.subr.bf16.mxu0 0
    %1073 = vmatpush1.bf16.msra.mxu0 0
    %1074 = vmatprep.subr.bf16.mxu0 0
    %1075 = vmatpush1.bf16.msra.mxu0 0
    %1076 = vmatprep.subr.bf16.mxu0 0
    %1077 = vmatpush1.bf16.msra.mxu0 0
    %1078 = vmatprep.subr.bf16.mxu0 0
    %1079 = vmatpush1.bf16.msra.mxu0 0
    %1080 = vmatprep.subr.bf16.mxu0 0
    %1081 = vmatpush1.bf16.msra.mxu0 0
    %1082 = vmatprep.subr.bf16.mxu0 0
    %1083 = vmatpush1.bf16.msra.mxu0 0
    %1084 = vmatprep.mubr.bf16.mxu0 0
    %1085 = vmatmul.mubr.bf16.gmra.mrb[0].mxu0 %v1051
    %v1086 = vpop.f32.mrb[0].mxu0
    %v1087 = vadd.f32 0.0, %v1086
    %v1088 = vpop.f32.mrb[0].mxu0
    %v1089 = vpop.f32.mrb[0].mxu0
    %v1090 = vpop.f32.mrb[0].mxu0
    %1091 = vdwg.mxu0
    %v1092 = vadd.f32 %v608, %v1087
    %v1093 = vtanh.pop %v1092
    %vm1094 = vcmp.eq.s32.totalorder %v54, 6
    %v1095 = vsel %vm1094, 1, 0
    %1096 = vset.pattern.permute.xlu0 0
    %1097 = vperm.xlu0 %1096, %v1095
    %v1098 = vpop.permute.xlu0 %1097
    %vm1099 = vcmp.eq.s32.totalorder %v1098, 1
    %v1100 = vsel %vm1099, %v1093, %v1050
    %v1101 = vpack.c.bf16 %v1093, %v1093
    %1102 = vmatprep.subr.bf16.mxu0 0
    %1103 = vmatpush1.bf16.msra.mxu0 %v736
    %1104 = vmatprep.subr.bf16.mxu0 0
    %1105 = vmatpush1.bf16.msra.mxu0 %v737
    %1106 = vmatprep.subr.bf16.mxu0 0
    %1107 = vmatpush1.bf16.msra.mxu0 %v738
    %1108 = vmatprep.subr.bf16.mxu0 0
    %1109 = vmatpush1.bf16.msra.mxu0 %v739
    %1110 = vmatprep.subr.bf16.mxu0 0
    %1111 = vmatpush1.bf16.msra.mxu0 %v740
    %1112 = vmatprep.subr.bf16.mxu0 0
    %1113 = vmatpush1.bf16.msra.mxu0 %v741
    %1114 = vmatprep.subr.bf16.mxu0 0
    %1115 = vmatpush1.bf16.msra.mxu0 %v742
    %1116 = vmatprep.subr.bf16.mxu0 0
    %1117 = vmatpush1.bf16.msra.mxu0 %v743
    %1118 = vmatprep.subr.bf16.mxu0 0
    %1119 = vmatpush1.bf16.msra.mxu0 0
    %1120 = vmatprep.subr.bf16.mxu0 0
    %1121 = vmatpush1.bf16.msra.mxu0 0
    %1122 = vmatprep.subr.bf16.mxu0 0
    %1123 = vmatpush1.bf16.msra.mxu0 0
    %1124 = vmatprep.subr.bf16.mxu0 0
    %1125 = vmatpush1.bf16.msra.mxu0 0
    %1126 = vmatprep.subr.bf16.mxu0 0
    %1127 = vmatpush1.bf16.msra.mxu0 0
    %1128 = vmatprep.subr.bf16.mxu0 0
    %1129 = vmatpush1.bf16.msra.mxu0 0
    %1130 = vmatprep.subr.bf16.mxu0 0
    %1131 = vmatpush1.bf16.msra.mxu0 0
    %1132 = vmatprep.subr.bf16.mxu0 0
    %1133 = vmatpush1.bf16.msra.mxu0 0
    %1134 = vmatprep.mubr.bf16.mxu0 0
    %1135 = vmatmul.mubr.bf16.gmra.mrb[0].mxu0 %v1101
    %v1136 = vpop.f32.mrb[0].mxu0
    %v1137 = vadd.f32 0.0, %v1136
    %v1138 = vpop.f32.mrb[0].mxu0
    %v1139 = vpop.f32.mrb[0].mxu0
    %v1140 = vpop.f32.mrb[0].mxu0
    %1141 = vdwg.mxu0
    %v1142 = vadd.f32 %v684, %v1137
    %v1143 = vtanh.pop %v1142
    %vm1144 = vcmp.eq.s32.totalorder %v54, 7
    %v1145 = vsel %vm1144, 1, 0
    %1146 = vset.pattern.permute.xlu0 0
    %1147 = vperm.xlu0 %1146, %v1145
    %v1148 = vpop.permute.xlu0 %1147
    %vm1149 = vcmp.eq.s32.totalorder %v1148, 1
    %v1150 = vsel %vm1149, %v1143, %v1100
    %vm1151 = vcmask 257024
    %1152 = vst.msk [vmem:[#allocation8] sm:$0xf] %vm1151, %v1150
    %v1153 = vld [vmem:[%s4 + $0x1] sm:$0x1]
    %v1154 = vld [vmem:[#allocation5] sm:$0xf]
    %v1155 = vld [vmem:[#allocation5 + $0x4] sm:$0xf]
    %v1156 = vld [vmem:[#allocation5 + $0x8] sm:$0xf]
    %v1157 = vld [vmem:[#allocation5 + $0xc] sm:$0xf]
    %v1158 = vld [vmem:[#allocation5 + $0x10] sm:$0xf]
    %v1159 = vld [vmem:[#allocation5 + $0x14] sm:$0xf]
    %v1160 = vld [vmem:[#allocation5 + $0x18] sm:$0xf]
    %v1161 = vld [vmem:[#allocation5 + $0x1c] sm:$0xf]
    %v1162 = vld [vmem:[#allocation5 + $0x20] sm:$0xf]
    %v1163 = vld [vmem:[#allocation5 + $0x24] sm:$0xf]
    %v1164 = vld [vmem:[#allocation5 + $0x28] sm:$0xf]
    %v1165 = vld [vmem:[#allocation5 + $0x2c] sm:$0xf]
    %v1166 = vld [vmem:[#allocation5 + $0x30] sm:$0xf]
    %v1167 = vld [vmem:[#allocation5 + $0x34] sm:$0xf]
    %v1168 = vld [vmem:[#allocation5 + $0x38] sm:$0xf]
    %v1169 = vld [vmem:[#allocation5 + $0x3c] sm:$0xf]
    %v1171 = vrot.slane %v843, 4
    %v1174 = vrot.slane %v943, 4
    %v1177 = vrot.slane %v1043, 4
    %v1180 = vrot.slane %v1143, 4
    %vm1182 = vcmask 1043456
    %v1183 = vsel %vm1182, %v793, %v1171
    %v1184 = vsel %vm1182, %v893, %v1174
    %v1185 = vsel %vm1182, %v993, %v1177
    %v1186 = vsel %vm1182, %v1093, %v1180
    %v1187 = vpack.c.bf16 %v1184, %v1183
    %v1188 = vpack.c.bf16 %v1186, %v1185
    %v1189 = vlaneseq
    %v1190 = vshrl.u32 %v1189, 7
    %v1191 = vsub.s32 0, %v1190
    %v1192 = vrot.slane %v1153, %v1191
    %v1209 = vunpack.c.l.b16 %v1154
    %v1210 = vunpack.c.l.b16 %v1155
    %v1211 = vunpack.c.l.b16 %v1156
    %v1212 = vunpack.c.l.b16 %v1157
    %v1213 = vunpack.c.l.b16 %v1158
    %v1214 = vunpack.c.l.b16 %v1159
    %v1215 = vunpack.c.l.b16 %v1160
    %v1216 = vunpack.c.l.b16 %v1161
    %v1217 = vunpack.c.l.b16 %v1162
    %v1218 = vunpack.c.l.b16 %v1163
    %v1219 = vunpack.c.l.b16 %v1164
    %v1220 = vunpack.c.l.b16 %v1165
    %v1221 = vunpack.c.l.b16 %v1166
    %v1222 = vunpack.c.l.b16 %v1167
    %v1223 = vunpack.c.l.b16 %v1168
    %v1224 = vunpack.c.l.b16 %v1169
    %v1225 = vpack.c.b16 %v1210, %v1209
    %v1226 = vpack.c.b16 %v1212, %v1211
    %v1227 = vpack.c.b16 %v1214, %v1213
    %v1228 = vpack.c.b16 %v1216, %v1215
    %v1229 = vpack.c.b16 %v1218, %v1217
    %v1230 = vpack.c.b16 %v1220, %v1219
    %v1231 = vpack.c.b16 %v1222, %v1221
    %v1232 = vpack.c.b16 %v1224, %v1223
    %1241 = vmatprep.subr.bf16.mxu0 0
    %1242 = vmatpush1.bf16.msra.mxu0 %v1225
    %1243 = vmatprep.subr.bf16.mxu0 0
    %1244 = vmatpush1.bf16.msra.mxu0 %v1226
    %1245 = vmatprep.subr.bf16.mxu0 0
    %1246 = vmatpush1.bf16.msra.mxu0 %v1227
    %1247 = vmatprep.subr.bf16.mxu0 0
    %1248 = vmatpush1.bf16.msra.mxu0 %v1228
    %1249 = vmatprep.subr.bf16.mxu0 0
    %1250 = vmatpush1.bf16.msra.mxu0 %v1229
    %1251 = vmatprep.subr.bf16.mxu0 0
    %1252 = vmatpush1.bf16.msra.mxu0 %v1230
    %1253 = vmatprep.subr.bf16.mxu0 0
    %1254 = vmatpush1.bf16.msra.mxu0 %v1231
    %1255 = vmatprep.subr.bf16.mxu0 0
    %1256 = vmatpush1.bf16.msra.mxu0 %v1232
    %1257 = vmatprep.subr.bf16.mxu0 0
    %1258 = vmatpush1.bf16.msra.mxu0 0
    %1259 = vmatprep.subr.bf16.mxu0 0
    %1260 = vmatpush1.bf16.msra.mxu0 0
    %1261 = vmatprep.subr.bf16.mxu0 0
    %1262 = vmatpush1.bf16.msra.mxu0 0
    %1263 = vmatprep.subr.bf16.mxu0 0
    %1264 = vmatpush1.bf16.msra.mxu0 0
    %1265 = vmatprep.subr.bf16.mxu0 0
    %1266 = vmatpush1.bf16.msra.mxu0 0
    %1267 = vmatprep.subr.bf16.mxu0 0
    %1268 = vmatpush1.bf16.msra.mxu0 0
    %1269 = vmatprep.subr.bf16.mxu0 0
    %1270 = vmatpush1.bf16.msra.mxu0 0
    %1271 = vmatprep.subr.bf16.mxu0 0
    %1272 = vmatpush1.bf16.msra.mxu0 0
    %1273 = vmatprep.mubr.bf16.mxu0 0
    %1274 = vmatmul.mubr.bf16.gmra.mrb[0].mxu0 %v1187
    %v1275 = vpop.f32.mrb[0].mxu0
    %v1276 = vadd.f32 %v1192, %v1275
    %v1277 = vpop.f32.mrb[0].mxu0
    %v1278 = vpop.f32.mrb[0].mxu0
    %v1279 = vadd.f32 %v1192, %v1278
    %v1280 = vpop.f32.mrb[0].mxu0
    %1281 = vmatprep.mubr.bf16.mxu0 0
    %1282 = vmatmul.mubr.bf16.gmra.mrb[0].mxu0 %v1188
    %v1283 = vpop.f32.mrb[0].mxu0
    %v1284 = vadd.f32 %v1192, %v1283
    %v1285 = vpop.f32.mrb[0].mxu0
    %v1286 = vpop.f32.mrb[0].mxu0
    %v1287 = vadd.f32 %v1192, %v1286
    %v1288 = vpop.f32.mrb[0].mxu0
    %1289 = vdwg.mxu0
    %s1290 = scalar_lea.vmem [#allocation5], 128
    %v1291 = vld [vmem:[%s1290] sm:$0xf]
    %v1292 = vld [vmem:[%s1290 + $0x4] sm:$0xf]
    %v1293 = vld [vmem:[%s1290 + $0x8] sm:$0xf]
    %v1294 = vld [vmem:[%s1290 + $0xc] sm:$0xf]
    %v1295 = vld [vmem:[%s1290 + $0x10] sm:$0xf]
    %v1296 = vld [vmem:[%s1290 + $0x14] sm:$0xf]
    %v1297 = vld [vmem:[%s1290 + $0x18] sm:$0xf]
    %v1298 = vld [vmem:[%s1290 + $0x1c] sm:$0xf]
    %v1299 = vld [vmem:[%s1290 + $0x20] sm:$0xf]
    %v1300 = vld [vmem:[%s1290 + $0x24] sm:$0xf]
    %v1301 = vld [vmem:[%s1290 + $0x28] sm:$0xf]
    %v1302 = vld [vmem:[%s1290 + $0x2c] sm:$0xf]
    %v1303 = vld [vmem:[%s1290 + $0x30] sm:$0xf]
    %v1304 = vld [vmem:[%s1290 + $0x34] sm:$0xf]
    %v1305 = vld [vmem:[%s1290 + $0x38] sm:$0xf]
    %v1306 = vld [vmem:[%s1290 + $0x3c] sm:$0xf]
    %v1323 = vunpack.c.l.b16 %v1291
    %v1324 = vunpack.c.l.b16 %v1292
    %v1325 = vunpack.c.l.b16 %v1293
    %v1326 = vunpack.c.l.b16 %v1294
    %v1327 = vunpack.c.l.b16 %v1295
    %v1328 = vunpack.c.l.b16 %v1296
    %v1329 = vunpack.c.l.b16 %v1297
    %v1330 = vunpack.c.l.b16 %v1298
    %v1331 = vunpack.c.l.b16 %v1299
    %v1332 = vunpack.c.l.b16 %v1300
    %v1333 = vunpack.c.l.b16 %v1301
    %v1334 = vunpack.c.l.b16 %v1302
    %v1335 = vunpack.c.l.b16 %v1303
    %v1336 = vunpack.c.l.b16 %v1304
    %v1337 = vunpack.c.l.b16 %v1305
    %v1338 = vunpack.c.l.b16 %v1306
    %v1339 = vpack.c.b16 %v1324, %v1323
    %v1340 = vpack.c.b16 %v1326, %v1325
    %v1341 = vpack.c.b16 %v1328, %v1327
    %v1342 = vpack.c.b16 %v1330, %v1329
    %v1343 = vpack.c.b16 %v1332, %v1331
    %v1344 = vpack.c.b16 %v1334, %v1333
    %v1345 = vpack.c.b16 %v1336, %v1335
    %v1346 = vpack.c.b16 %v1338, %v1337
    %1355 = vmatprep.subr.bf16.mxu0 0
    %1356 = vmatpush1.bf16.msra.mxu0 %v1339
    %1357 = vmatprep.subr.bf16.mxu0 0
    %1358 = vmatpush1.bf16.msra.mxu0 %v1340
    %1359 = vmatprep.subr.bf16.mxu0 0
    %1360 = vmatpush1.bf16.msra.mxu0 %v1341
    %1361 = vmatprep.subr.bf16.mxu0 0
    %1362 = vmatpush1.bf16.msra.mxu0 %v1342
    %1363 = vmatprep.subr.bf16.mxu0 0
    %1364 = vmatpush1.bf16.msra.mxu0 %v1343
    %1365 = vmatprep.subr.bf16.mxu0 0
    %1366 = vmatpush1.bf16.msra.mxu0 %v1344
    %1367 = vmatprep.subr.bf16.mxu0 0
    %1368 = vmatpush1.bf16.msra.mxu0 %v1345
    %1369 = vmatprep.subr.bf16.mxu0 0
    %1370 = vmatpush1.bf16.msra.mxu0 %v1346
    %1371 = vmatprep.subr.bf16.mxu0 0
    %1372 = vmatpush1.bf16.msra.mxu0 0
    %1373 = vmatprep.subr.bf16.mxu0 0
    %1374 = vmatpush1.bf16.msra.mxu0 0
    %1375 = vmatprep.subr.bf16.mxu0 0
    %1376 = vmatpush1.bf16.msra.mxu0 0
    %1377 = vmatprep.subr.bf16.mxu0 0
    %1378 = vmatpush1.bf16.msra.mxu0 0
    %1379 = vmatprep.subr.bf16.mxu0 0
    %1380 = vmatpush1.bf16.msra.mxu0 0
    %1381 = vmatprep.subr.bf16.mxu0 0
    %1382 = vmatpush1.bf16.msra.mxu0 0
    %1383 = vmatprep.subr.bf16.mxu0 0
    %1384 = vmatpush1.bf16.msra.mxu0 0
    %1385 = vmatprep.subr.bf16.mxu0 0
    %1386 = vmatpush1.bf16.msra.mxu0 0
    %1387 = vmatprep.mubr.bf16.mxu0 0
    %1388 = vmatmul.mubr.bf16.gmra.mrb[0].mxu0 0
    %v1389 = vpop.f32.mrb[0].mxu0
    %v1390 = vadd.f32 0.0, %v1389
    %v1391 = vpop.f32.mrb[0].mxu0
    %v1392 = vpop.f32.mrb[0].mxu0
    %v1393 = vpop.f32.mrb[0].mxu0
    %1394 = vdwg.mxu0
    %v1395 = vadd.f32 %v1276, %v1390
    %v1396 = vtanh.pop %v1395
    %v1397 = vsel %vm799, %v1396, 0.0
    %v1398 = vpack.c.bf16 %v1396, %v1396
    %1399 = vmatprep.subr.bf16.mxu0 0
    %1400 = vmatpush1.bf16.msra.mxu0 %v1339
    %1401 = vmatprep.subr.bf16.mxu0 0
    %1402 = vmatpush1.bf16.msra.mxu0 %v1340
    %1403 = vmatprep.subr.bf16.mxu0 0
    %1404 = vmatpush1.bf16.msra.mxu0 %v1341
    %1405 = vmatprep.subr.bf16.mxu0 0
    %1406 = vmatpush1.bf16.msra.mxu0 %v1342
    %1407 = vmatprep.subr.bf16.mxu0 0
    %1408 = vmatpush1.bf16.msra.mxu0 %v1343
    %1409 = vmatprep.subr.bf16.mxu0 0
    %1410 = vmatpush1.bf16.msra.mxu0 %v1344
    %1411 = vmatprep.subr.bf16.mxu0 0
    %1412 = vmatpush1.bf16.msra.mxu0 %v1345
    %1413 = vmatprep.subr.bf16.mxu0 0
    %1414 = vmatpush1.bf16.msra.mxu0 %v1346
    %1415 = vmatprep.subr.bf16.mxu0 0
    %1416 = vmatpush1.bf16.msra.mxu0 0
    %1417 = vmatprep.subr.bf16.mxu0 0
    %1418 = vmatpush1.bf16.msra.mxu0 0
    %1419 = vmatprep.subr.bf16.mxu0 0
    %1420 = vmatpush1.bf16.msra.mxu0 0
    %1421 = vmatprep.subr.bf16.mxu0 0
    %1422 = vmatpush1.bf16.msra.mxu0 0
    %1423 = vmatprep.subr.bf16.mxu0 0
    %1424 = vmatpush1.bf16.msra.mxu0 0
    %1425 = vmatprep.subr.bf16.mxu0 0
    %1426 = vmatpush1.bf16.msra.mxu0 0
    %1427 = vmatprep.subr.bf16.mxu0 0
    %1428 = vmatpush1.bf16.msra.mxu0 0
    %1429 = vmatprep.subr.bf16.mxu0 0
    %1430 = vmatpush1.bf16.msra.mxu0 0
    %1431 = vmatprep.mubr.bf16.mxu0 0
    %1432 = vmatmul.mubr.bf16.gmra.mrb[0].mxu0 %v1398
    %v1433 = vpop.f32.mrb[0].mxu0
    %v1434 = vadd.f32 0.0, %v1433
    %v1435 = vpop.f32.mrb[0].mxu0
    %v1436 = vpop.f32.mrb[0].mxu0
    %v1437 = vpop.f32.mrb[0].mxu0
    %1438 = vdwg.mxu0
    %v1440 = vrot.slane %v1434, 4
    %v1442 = vadd.f32 %v1276, %v1440
    %v1443 = vtanh.pop %v1442
    %v1445 = vrot.slane %v1443, 4
    %v1447 = vsel %vm849, %v1445, %v1397
    %v1448 = vpack.c.bf16 %v1443, %v1443
    %v1450 = vrot.slane %v1448, 2
    %1452 = vmatprep.subr.bf16.mxu0 0
    %1453 = vmatpush1.bf16.msra.mxu0 %v1339
    %1454 = vmatprep.subr.bf16.mxu0 0
    %1455 = vmatpush1.bf16.msra.mxu0 %v1340
    %1456 = vmatprep.subr.bf16.mxu0 0
    %1457 = vmatpush1.bf16.msra.mxu0 %v1341
    %1458 = vmatprep.subr.bf16.mxu0 0
    %1459 = vmatpush1.bf16.msra.mxu0 %v1342
    %1460 = vmatprep.subr.bf16.mxu0 0
    %1461 = vmatpush1.bf16.msra.mxu0 %v1343
    %1462 = vmatprep.subr.bf16.mxu0 0
    %1463 = vmatpush1.bf16.msra.mxu0 %v1344
    %1464 = vmatprep.subr.bf16.mxu0 0
    %1465 = vmatpush1.bf16.msra.mxu0 %v1345
    %1466 = vmatprep.subr.bf16.mxu0 0
    %1467 = vmatpush1.bf16.msra.mxu0 %v1346
    %1468 = vmatprep.subr.bf16.mxu0 0
    %1469 = vmatpush1.bf16.msra.mxu0 0
    %1470 = vmatprep.subr.bf16.mxu0 0
    %1471 = vmatpush1.bf16.msra.mxu0 0
    %1472 = vmatprep.subr.bf16.mxu0 0
    %1473 = vmatpush1.bf16.msra.mxu0 0
    %1474 = vmatprep.subr.bf16.mxu0 0
    %1475 = vmatpush1.bf16.msra.mxu0 0
    %1476 = vmatprep.subr.bf16.mxu0 0
    %1477 = vmatpush1.bf16.msra.mxu0 0
    %1478 = vmatprep.subr.bf16.mxu0 0
    %1479 = vmatpush1.bf16.msra.mxu0 0
    %1480 = vmatprep.subr.bf16.mxu0 0
    %1481 = vmatpush1.bf16.msra.mxu0 0
    %1482 = vmatprep.subr.bf16.mxu0 0
    %1483 = vmatpush1.bf16.msra.mxu0 0
    %1484 = vmatprep.mubr.bf16.mxu0 0
    %1485 = vmatmul.mubr.bf16.gmra.mrb[0].mxu0 %v1450
    %v1486 = vpop.f32.mrb[0].mxu0
    %v1487 = vadd.f32 0.0, %v1486
    %v1488 = vpop.f32.mrb[0].mxu0
    %v1489 = vpop.f32.mrb[0].mxu0
    %v1490 = vpop.f32.mrb[0].mxu0
    %1491 = vdwg.mxu0
    %v1492 = vadd.f32 %v1279, %v1487
    %v1493 = vtanh.pop %v1492
    %v1494 = vsel %vm899, %v1493, %v1447
    %v1495 = vpack.c.bf16 %v1493, %v1493
    %1496 = vmatprep.subr.bf16.mxu0 0
    %1497 = vmatpush1.bf16.msra.mxu0 %v1339
    %1498 = vmatprep.subr.bf16.mxu0 0
    %1499 = vmatpush1.bf16.msra.mxu0 %v1340
    %1500 = vmatprep.subr.bf16.mxu0 0
    %1501 = vmatpush1.bf16.msra.mxu0 %v1341
    %1502 = vmatprep.subr.bf16.mxu0 0
    %1503 = vmatpush1.bf16.msra.mxu0 %v1342
    %1504 = vmatprep.subr.bf16.mxu0 0
    %1505 = vmatpush1.bf16.msra.mxu0 %v1343
    %1506 = vmatprep.subr.bf16.mxu0 0
    %1507 = vmatpush1.bf16.msra.mxu0 %v1344
    %1508 = vmatprep.subr.bf16.mxu0 0
    %1509 = vmatpush1.bf16.msra.mxu0 %v1345
    %1510 = vmatprep.subr.bf16.mxu0 0
    %1511 = vmatpush1.bf16.msra.mxu0 %v1346
    %1512 = vmatprep.subr.bf16.mxu0 0
    %1513 = vmatpush1.bf16.msra.mxu0 0
    %1514 = vmatprep.subr.bf16.mxu0 0
    %1515 = vmatpush1.bf16.msra.mxu0 0
    %1516 = vmatprep.subr.bf16.mxu0 0
    %1517 = vmatpush1.bf16.msra.mxu0 0
    %1518 = vmatprep.subr.bf16.mxu0 0
    %1519 = vmatpush1.bf16.msra.mxu0 0
    %1520 = vmatprep.subr.bf16.mxu0 0
    %1521 = vmatpush1.bf16.msra.mxu0 0
    %1522 = vmatprep.subr.bf16.mxu0 0
    %1523 = vmatpush1.bf16.msra.mxu0 0
    %1524 = vmatprep.subr.bf16.mxu0 0
    %1525 = vmatpush1.bf16.msra.mxu0 0
    %1526 = vmatprep.subr.bf16.mxu0 0
    %1527 = vmatpush1.bf16.msra.mxu0 0
    %1528 = vmatprep.mubr.bf16.mxu0 0
    %1529 = vmatmul.mubr.bf16.gmra.mrb[0].mxu0 %v1495
    %v1530 = vpop.f32.mrb[0].mxu0
    %v1531 = vadd.f32 0.0, %v1530
    %v1532 = vpop.f32.mrb[0].mxu0
    %v1533 = vpop.f32.mrb[0].mxu0
    %v1534 = vpop.f32.mrb[0].mxu0
    %1535 = vdwg.mxu0
    %v1537 = vrot.slane %v1531, 4
    %v1539 = vadd.f32 %v1279, %v1537
    %v1540 = vtanh.pop %v1539
    %v1542 = vrot.slane %v1540, 4
    %v1544 = vsel %vm949, %v1542, %v1494
    %v1545 = vpack.c.bf16 %v1540, %v1540
    %v1547 = vrot.slane %v1545, 2
    %1549 = vmatprep.subr.bf16.mxu0 0
    %1550 = vmatpush1.bf16.msra.mxu0 %v1339
    %1551 = vmatprep.subr.bf16.mxu0 0
    %1552 = vmatpush1.bf16.msra.mxu0 %v1340
    %1553 = vmatprep.subr.bf16.mxu0 0
    %1554 = vmatpush1.bf16.msra.mxu0 %v1341
    %1555 = vmatprep.subr.bf16.mxu0 0
    %1556 = vmatpush1.bf16.msra.mxu0 %v1342
    %1557 = vmatprep.subr.bf16.mxu0 0
    %1558 = vmatpush1.bf16.msra.mxu0 %v1343
    %1559 = vmatprep.subr.bf16.mxu0 0
    %1560 = vmatpush1.bf16.msra.mxu0 %v1344
    %1561 = vmatprep.subr.bf16.mxu0 0
    %1562 = vmatpush1.bf16.msra.mxu0 %v1345
    %1563 = vmatprep.subr.bf16.mxu0 0
    %1564 = vmatpush1.bf16.msra.mxu0 %v1346
    %1565 = vmatprep.subr.bf16.mxu0 0
    %1566 = vmatpush1.bf16.msra.mxu0 0
    %1567 = vmatprep.subr.bf16.mxu0 0
    %1568 = vmatpush1.bf16.msra.mxu0 0
    %1569 = vmatprep.subr.bf16.mxu0 0
    %1570 = vmatpush1.bf16.msra.mxu0 0
    %1571 = vmatprep.subr.bf16.mxu0 0
    %1572 = vmatpush1.bf16.msra.mxu0 0
    %1573 = vmatprep.subr.bf16.mxu0 0
    %1574 = vmatpush1.bf16.msra.mxu0 0
    %1575 = vmatprep.subr.bf16.mxu0 0
    %1576 = vmatpush1.bf16.msra.mxu0 0
    %1577 = vmatprep.subr.bf16.mxu0 0
    %1578 = vmatpush1.bf16.msra.mxu0 0
    %1579 = vmatprep.subr.bf16.mxu0 0
    %1580 = vmatpush1.bf16.msra.mxu0 0
    %1581 = vmatprep.mubr.bf16.mxu0 0
    %1582 = vmatmul.mubr.bf16.gmra.mrb[0].mxu0 %v1547
    %v1583 = vpop.f32.mrb[0].mxu0
    %v1584 = vadd.f32 0.0, %v1583
    %v1585 = vpop.f32.mrb[0].mxu0
    %v1586 = vpop.f32.mrb[0].mxu0
    %v1587 = vpop.f32.mrb[0].mxu0
    %1588 = vdwg.mxu0
    %v1589 = vadd.f32 %v1284, %v1584
    %v1590 = vtanh.pop %v1589
    %v1591 = vsel %vm999, %v1590, %v1544
    %v1592 = vpack.c.bf16 %v1590, %v1590
    %1593 = vmatprep.subr.bf16.mxu0 0
    %1594 = vmatpush1.bf16.msra.mxu0 %v1339
    %1595 = vmatprep.subr.bf16.mxu0 0
    %1596 = vmatpush1.bf16.msra.mxu0 %v1340
    %1597 = vmatprep.subr.bf16.mxu0 0
    %1598 = vmatpush1.bf16.msra.mxu0 %v1341
    %1599 = vmatprep.subr.bf16.mxu0 0
    %1600 = vmatpush1.bf16.msra.mxu0 %v1342
    %1601 = vmatprep.subr.bf16.mxu0 0
    %1602 = vmatpush1.bf16.msra.mxu0 %v1343
    %1603 = vmatprep.subr.bf16.mxu0 0
    %1604 = vmatpush1.bf16.msra.mxu0 %v1344
    %1605 = vmatprep.subr.bf16.mxu0 0
    %1606 = vmatpush1.bf16.msra.mxu0 %v1345
    %1607 = vmatprep.subr.bf16.mxu0 0
    %1608 = vmatpush1.bf16.msra.mxu0 %v1346
    %1609 = vmatprep.subr.bf16.mxu0 0
    %1610 = vmatpush1.bf16.msra.mxu0 0
    %1611 = vmatprep.subr.bf16.mxu0 0
    %1612 = vmatpush1.bf16.msra.mxu0 0
    %1613 = vmatprep.subr.bf16.mxu0 0
    %1614 = vmatpush1.bf16.msra.mxu0 0
    %1615 = vmatprep.subr.bf16.mxu0 0
    %1616 = vmatpush1.bf16.msra.mxu0 0
    %1617 = vmatprep.subr.bf16.mxu0 0
    %1618 = vmatpush1.bf16.msra.mxu0 0
    %1619 = vmatprep.subr.bf16.mxu0 0
    %1620 = vmatpush1.bf16.msra.mxu0 0
    %1621 = vmatprep.subr.bf16.mxu0 0
    %1622 = vmatpush1.bf16.msra.mxu0 0
    %1623 = vmatprep.subr.bf16.mxu0 0
    %1624 = vmatpush1.bf16.msra.mxu0 0
    %1625 = vmatprep.mubr.bf16.mxu0 0
    %1626 = vmatmul.mubr.bf16.gmra.mrb[0].mxu0 %v1592
    %v1627 = vpop.f32.mrb[0].mxu0
    %v1628 = vadd.f32 0.0, %v1627
    %v1629 = vpop.f32.mrb[0].mxu0
    %v1630 = vpop.f32.mrb[0].mxu0
    %v1631 = vpop.f32.mrb[0].mxu0
    %1632 = vdwg.mxu0
    %v1634 = vrot.slane %v1628, 4
    %v1636 = vadd.f32 %v1284, %v1634
    %v1637 = vtanh.pop %v1636
    %v1639 = vrot.slane %v1637, 4
    %v1641 = vsel %vm1049, %v1639, %v1591
    %v1642 = vpack.c.bf16 %v1637, %v1637
    %v1644 = vrot.slane %v1642, 2
    %1646 = vmatprep.subr.bf16.mxu0 0
    %1647 = vmatpush1.bf16.msra.mxu0 %v1339
    %1648 = vmatprep.subr.bf16.mxu0 0
    %1649 = vmatpush1.bf16.msra.mxu0 %v1340
    %1650 = vmatprep.subr.bf16.mxu0 0
    %1651 = vmatpush1.bf16.msra.mxu0 %v1341
    %1652 = vmatprep.subr.bf16.mxu0 0
    %1653 = vmatpush1.bf16.msra.mxu0 %v1342
    %1654 = vmatprep.subr.bf16.mxu0 0
    %1655 = vmatpush1.bf16.msra.mxu0 %v1343
    %1656 = vmatprep.subr.bf16.mxu0 0
    %1657 = vmatpush1.bf16.msra.mxu0 %v1344
    %1658 = vmatprep.subr.bf16.mxu0 0
    %1659 = vmatpush1.bf16.msra.mxu0 %v1345
    %1660 = vmatprep.subr.bf16.mxu0 0
    %1661 = vmatpush1.bf16.msra.mxu0 %v1346
    %1662 = vmatprep.subr.bf16.mxu0 0
    %1663 = vmatpush1.bf16.msra.mxu0 0
    %1664 = vmatprep.subr.bf16.mxu0 0
    %1665 = vmatpush1.bf16.msra.mxu0 0
    %1666 = vmatprep.subr.bf16.mxu0 0
    %1667 = vmatpush1.bf16.msra.mxu0 0
    %1668 = vmatprep.subr.bf16.mxu0 0
    %1669 = vmatpush1.bf16.msra.mxu0 0
    %1670 = vmatprep.subr.bf16.mxu0 0
    %1671 = vmatpush1.bf16.msra.mxu0 0
    %1672 = vmatprep.subr.bf16.mxu0 0
    %1673 = vmatpush1.bf16.msra.mxu0 0
    %1674 = vmatprep.subr.bf16.mxu0 0
    %1675 = vmatpush1.bf16.msra.mxu0 0
    %1676 = vmatprep.subr.bf16.mxu0 0
    %1677 = vmatpush1.bf16.msra.mxu0 0
    %1678 = vmatprep.mubr.bf16.mxu0 0
    %1679 = vmatmul.mubr.bf16.gmra.mrb[0].mxu0 %v1644
    %v1680 = vpop.f32.mrb[0].mxu0
    %v1681 = vadd.f32 0.0, %v1680
    %v1682 = vpop.f32.mrb[0].mxu0
    %v1683 = vpop.f32.mrb[0].mxu0
    %v1684 = vpop.f32.mrb[0].mxu0
    %1685 = vdwg.mxu0
    %v1686 = vadd.f32 %v1287, %v1681
    %v1687 = vtanh.pop %v1686
    %v1688 = vsel %vm1099, %v1687, %v1641
    %v1689 = vpack.c.bf16 %v1687, %v1687
    %1690 = vmatprep.subr.bf16.mxu0 0
    %1691 = vmatpush1.bf16.msra.mxu0 %v1339
    %1692 = vmatprep.subr.bf16.mxu0 0
    %1693 = vmatpush1.bf16.msra.mxu0 %v1340
    %1694 = vmatprep.subr.bf16.mxu0 0
    %1695 = vmatpush1.bf16.msra.mxu0 %v1341
    %1696 = vmatprep.subr.bf16.mxu0 0
    %1697 = vmatpush1.bf16.msra.mxu0 %v1342
    %1698 = vmatprep.subr.bf16.mxu0 0
    %1699 = vmatpush1.bf16.msra.mxu0 %v1343
    %1700 = vmatprep.subr.bf16.mxu0 0
    %1701 = vmatpush1.bf16.msra.mxu0 %v1344
    %1702 = vmatprep.subr.bf16.mxu0 0
    %1703 = vmatpush1.bf16.msra.mxu0 %v1345
    %1704 = vmatprep.subr.bf16.mxu0 0
    %1705 = vmatpush1.bf16.msra.mxu0 %v1346
    %1706 = vmatprep.subr.bf16.mxu0 0
    %1707 = vmatpush1.bf16.msra.mxu0 0
    %1708 = vmatprep.subr.bf16.mxu0 0
    %1709 = vmatpush1.bf16.msra.mxu0 0
    %1710 = vmatprep.subr.bf16.mxu0 0
    %1711 = vmatpush1.bf16.msra.mxu0 0
    %1712 = vmatprep.subr.bf16.mxu0 0
    %1713 = vmatpush1.bf16.msra.mxu0 0
    %1714 = vmatprep.subr.bf16.mxu0 0
    %1715 = vmatpush1.bf16.msra.mxu0 0
    %1716 = vmatprep.subr.bf16.mxu0 0
    %1717 = vmatpush1.bf16.msra.mxu0 0
    %1718 = vmatprep.subr.bf16.mxu0 0
    %1719 = vmatpush1.bf16.msra.mxu0 0
    %1720 = vmatprep.subr.bf16.mxu0 0
    %1721 = vmatpush1.bf16.msra.mxu0 0
    %1722 = vmatprep.mubr.bf16.mxu0 0
    %1723 = vmatmul.mubr.bf16.gmra.mrb[0].mxu0 %v1689
    %v1724 = vpop.f32.mrb[0].mxu0
    %v1725 = vadd.f32 0.0, %v1724
    %v1726 = vpop.f32.mrb[0].mxu0
    %v1727 = vpop.f32.mrb[0].mxu0
    %v1728 = vpop.f32.mrb[0].mxu0
    %1729 = vdwg.mxu0
    %v1731 = vrot.slane %v1725, 4
    %v1733 = vadd.f32 %v1287, %v1731
    %v1734 = vtanh.pop %v1733
    %v1736 = vrot.slane %v1734, 4
    %v1738 = vsel %vm1149, %v1736, %v1688
    %s1739 = scalar_lea.vmem [#allocation8], 4
    %1740 = vst.msk [vmem:[%s1739] sm:$0xf] %vm1151, %v1738
    %s1741 = scalar_lea.vmem [#allocation5], 192
    %v1742 = vld [vmem:[%s1741] sm:$0xf]
    %v1743 = vld [vmem:[%s1741 + $0x4] sm:$0xf]
    %v1744 = vld [vmem:[%s1741 + $0x8] sm:$0xf]
    %v1745 = vld [vmem:[%s1741 + $0xc] sm:$0xf]
    %v1746 = vld [vmem:[%s1741 + $0x10] sm:$0xf]
    %v1747 = vld [vmem:[%s1741 + $0x14] sm:$0xf]
    %v1748 = vld [vmem:[%s1741 + $0x18] sm:$0xf]
    %v1749 = vld [vmem:[%s1741 + $0x1c] sm:$0xf]
    %v1750 = vld [vmem:[%s1741 + $0x20] sm:$0xf]
    %v1751 = vld [vmem:[%s1741 + $0x24] sm:$0xf]
    %v1752 = vld [vmem:[%s1741 + $0x28] sm:$0xf]
    %v1753 = vld [vmem:[%s1741 + $0x2c] sm:$0xf]
    %v1754 = vld [vmem:[%s1741 + $0x30] sm:$0xf]
    %v1755 = vld [vmem:[%s1741 + $0x34] sm:$0xf]
    %v1756 = vld [vmem:[%s1741 + $0x38] sm:$0xf]
    %v1757 = vld [vmem:[%s1741 + $0x3c] sm:$0xf]
    %v1758 = vld [vmem:[%s4 + $0x2] sm:$0x1]
    %v1759 = vpack.c.bf16 %v1738, %v1738
    %v1760 = vlaneseq
    %v1761 = vshrl.u32 %v1760, 7
    %v1762 = vsub.s32 0, %v1761
    %v1763 = vrot.slane %v1758, %v1762
    %v1780 = vunpack.c.l.b16 %v1742
    %v1781 = vunpack.c.l.b16 %v1743
    %v1782 = vunpack.c.l.b16 %v1744
    %v1783 = vunpack.c.l.b16 %v1745
    %v1784 = vunpack.c.l.b16 %v1746
    %v1785 = vunpack.c.l.b16 %v1747
    %v1786 = vunpack.c.l.b16 %v1748
    %v1787 = vunpack.c.l.b16 %v1749
    %v1788 = vunpack.c.l.b16 %v1750
    %v1789 = vunpack.c.l.b16 %v1751
    %v1790 = vunpack.c.l.b16 %v1752
    %v1791 = vunpack.c.l.b16 %v1753
    %v1792 = vunpack.c.l.b16 %v1754
    %v1793 = vunpack.c.l.b16 %v1755
    %v1794 = vunpack.c.l.b16 %v1756
    %v1795 = vunpack.c.l.b16 %v1757
    %v1796 = vpack.c.b16 %v1781, %v1780
    %v1797 = vpack.c.b16 %v1783, %v1782
    %v1798 = vpack.c.b16 %v1785, %v1784
    %v1799 = vpack.c.b16 %v1787, %v1786
    %v1800 = vpack.c.b16 %v1789, %v1788
    %v1801 = vpack.c.b16 %v1791, %v1790
    %v1802 = vpack.c.b16 %v1793, %v1792
    %v1803 = vpack.c.b16 %v1795, %v1794
    %1812 = vmatprep.subr.bf16.mxu0 0
    %1813 = vmatpush1.bf16.msra.mxu0 %v1796
    %1814 = vmatprep.subr.bf16.mxu0 0
    %1815 = vmatpush1.bf16.msra.mxu0 %v1797
    %1816 = vmatprep.subr.bf16.mxu0 0
    %1817 = vmatpush1.bf16.msra.mxu0 %v1798
    %1818 = vmatprep.subr.bf16.mxu0 0
    %1819 = vmatpush1.bf16.msra.mxu0 %v1799
    %1820 = vmatprep.subr.bf16.mxu0 0
    %1821 = vmatpush1.bf16.msra.mxu0 %v1800
    %1822 = vmatprep.subr.bf16.mxu0 0
    %1823 = vmatpush1.bf16.msra.mxu0 %v1801
    %1824 = vmatprep.subr.bf16.mxu0 0
    %1825 = vmatpush1.bf16.msra.mxu0 %v1802
    %1826 = vmatprep.subr.bf16.mxu0 0
    %1827 = vmatpush1.bf16.msra.mxu0 %v1803
    %1828 = vmatprep.subr.bf16.mxu0 0
    %1829 = vmatpush1.bf16.msra.mxu0 0
    %1830 = vmatprep.subr.bf16.mxu0 0
    %1831 = vmatpush1.bf16.msra.mxu0 0
    %1832 = vmatprep.subr.bf16.mxu0 0
    %1833 = vmatpush1.bf16.msra.mxu0 0
    %1834 = vmatprep.subr.bf16.mxu0 0
    %1835 = vmatpush1.bf16.msra.mxu0 0
    %1836 = vmatprep.subr.bf16.mxu0 0
    %1837 = vmatpush1.bf16.msra.mxu0 0
    %1838 = vmatprep.subr.bf16.mxu0 0
    %1839 = vmatpush1.bf16.msra.mxu0 0
    %1840 = vmatprep.subr.bf16.mxu0 0
    %1841 = vmatpush1.bf16.msra.mxu0 0
    %1842 = vmatprep.subr.bf16.mxu0 0
    %1843 = vmatpush1.bf16.msra.mxu0 0
    %1844 = vmatprep.mubr.bf16.mxu0 0
    %1845 = vmatmul.mubr.bf16.gmra.mrb[0].mxu0 %v1759
    %v1846 = vpop.f32.mrb[0].mxu0
    %v1847 = vadd.f32 %v1763, %v1846
    %v1848 = vpop.f32.mrb[0].mxu0
    %v1849 = vpop.f32.mrb[0].mxu0
    %v1850 = vpop.f32.mrb[0].mxu0
    %1851 = vdwg.mxu0
    %vm1852 = vcmp.lt.s32.totalorder %v57, 8
    %v1853 = vsel %vm1852, %v1847, -1e+30
    %v1854 = vsel %vm1182, %v1853, -inf
    %1855 = vmax.xlane.f32.xlu0 %v1854
    %v1856 = vpop.xlane.xlu0 %1855
    %v1857 = vsub.f32 %v1853, %v1856
    %v1858 = vmul.f32 %v1857, 1.442695
    %v1859 = vpow.pop %v1858
    %v1860 = vsel %vm1182, %v1859, 0.0
    %1861 = vadd.xlane.f32.xlu0 %v1860
    %v1862 = vpop.xlane.xlu0 %1861
    %v1863 = vlog2.pop %v1862
    %v1864 = vmul.f32 %v1863, 0.6931472
    %v1865 = vsub.f32 %v1857, %v1864
    %vm1866 = vcmask 60416
    %1867 = vst.msk [vmem:[#allocation7] sm:$0xf] %vm1866, %v1865
    // Predicated region
    $region30: #{textclass_forward.1} parent=1 // pred_check
      _
    $region31: #{textclass_forward.1} parent=1 // pred_check_branch
      %1869 = sbr.rel (0) target = $region33
    $region32: #{textclass_forward.1} parent=1 // pred_region
      %s1871 = ssub.s32 64, 64
      %1872 = vsyncadd [#allocation4], %s1871
      %s1874 = sshll.u32 [#allocation7], 4
      %s1875 = int_to_ptr.vmem [resolvable:$true] %s1874
      %1877 = dma.vmem_to_hbm [thread:$0]  %s1875, 64, %s5, [#allocation4]
    $region33: #{textclass_forward.1} parent=1 // pred_fallthru
      _
    // Predicated region
    $region34: #{textclass_forward.1} parent=1 // pred_check
      _
    $region35: #{textclass_forward.1} parent=1 // pred_check_branch
      %1879 = sbr.rel (0) target = $region37
    $region36: #{textclass_forward.1} parent=1 // pred_region
      %s1881 = ssub.s32 128, 128
      %1882 = vsyncadd [#allocation9], %s1881
      %s1883 = sshll.u32 [#allocation8], 4
      %s1884 = int_to_ptr.vmem [resolvable:$true] %s1883
      %1889 = dma.vmem_to_hbm [thread:$0]  %s1884, 128, %s6, [#allocation9], 64, 64, 4
    $region37: #{textclass_forward.1} parent=1 // pred_fallthru
      _
    // Predicated region
    $region38: #{textclass_forward.1} parent=1 // pred_check
      _
    $region39: #{textclass_forward.1} parent=1 // pred_check_branch
      %1891 = sbr.rel (0) target = $region41
    $region40: #{textclass_forward.1} parent=1 // pred_region
      %1892 = dma.done [#allocation4], 64
    $region41: #{textclass_forward.1} parent=1 // pred_fallthru
      _
    // Predicated region
    $region42: #{textclass_forward.1} parent=1 // pred_check
      _
    $region43: #{textclass_forward.1} parent=1 // pred_check_branch
      %1894 = sbr.rel (0) target = $region45
    $region44: #{textclass_forward.1} parent=1 // pred_region
      %1895 = dma.done [#allocation9], 128
    $region45: #{textclass_forward.1} parent=1 // pred_fallthru
      _
    %1896 = vsyncpa [#allocation3], 1
    %1897 = vsyncpa [#allocation6], 1
    %1898 = vsyncpa [#allocation4], 1
    %1899 = vsyncpa [#allocation9], 1

</llo_original>
